<compile_context>
chip_gen: v5e
topology: v5e:2x2
jax: 0.10.0
libtpu: 0.0.40
codegen_flags: <defaults>
</compile_context>

<pallas_src>
import math
import functools

import jax
import jax.numpy as jnp
from jax import lax
from jax.experimental import pallas as pl
from jax.experimental.pallas import tpu as pltpu


# Version-robust CompilerParams handle.
_CompilerParams = getattr(pltpu, "CompilerParams", None) or getattr(pltpu, "TPUCompilerParams")


def _mosaic_params(dims):
    return _CompilerParams(dimension_semantics=dims,
                           vmem_limit_bytes=32 * 1024 * 1024)


def _pick_tile(dim, target):
    """Largest legal tile: full dim if small, else `target` when it divides."""
    if dim <= target:
        return dim
    if dim % target == 0:
        return target
    return dim  # fallback: full dim keeps the (8,128) rule satisfied


# ----------------------------- Pallas kernels ------------------------------

def _layernorm_kernel(x_ref, g_ref, b_ref, o_ref):
    x = x_ref[...].astype(jnp.float32)
    mean = jnp.mean(x, axis=-1, keepdims=True)
    var = jnp.mean((x - mean) ** 2, axis=-1, keepdims=True)
    xn = (x - mean) * lax.rsqrt(var + 1e-5)
    o_ref[...] = (xn * g_ref[...] + b_ref[...]).astype(o_ref.dtype)


def _ln_matmul_kernel(x_ref, g_ref, bln_ref, w_ref, b_ref, o_ref, *, activation):
    # LayerNorm prologue (needs full feature row -> K is not tiled here).
    x = x_ref[...].astype(jnp.float32)
    mean = jnp.mean(x, axis=-1, keepdims=True)
    var = jnp.mean((x - mean) ** 2, axis=-1, keepdims=True)
    xn = (x - mean) * lax.rsqrt(var + 1e-5)
    h = xn * g_ref[...].astype(jnp.float32) + bln_ref[...].astype(jnp.float32)
    # Matmul + bias (+ optional exact-erf GELU epilogue).
    y = jnp.dot(h, w_ref[...].astype(jnp.float32), preferred_element_type=jnp.float32)
    y = y + b_ref[...].astype(jnp.float32)
    if activation == "gelu":
        y = 0.5 * y * (1.0 + lax.erf(y * (1.0 / math.sqrt(2.0))))
    o_ref[...] = y.astype(o_ref.dtype)


def _matmul_res_kernel(x_ref, w_ref, b_ref, r_ref, o_ref, acc_ref):
    k = pl.program_id(2)

    @pl.when(k == 0)
    def _():
        acc_ref[...] = jnp.zeros_like(acc_ref)

    acc_ref[...] += jnp.dot(x_ref[...].astype(jnp.float32),
                            w_ref[...].astype(jnp.float32),
                            preferred_element_type=jnp.float32)

    @pl.when(k == pl.num_programs(2) - 1)
    def _():
        y = acc_ref[...] + b_ref[...].astype(jnp.float32) + r_ref[...].astype(jnp.float32)
        o_ref[...] = y.astype(o_ref.dtype)


def _attn_core_kernel(q_ref, k_ref, v_ref, o_ref, acc_ref, *, scale):
    qi = pl.program_id(0)
    ki = pl.program_id(1)

    @pl.when(ki == 0)
    def _():
        acc_ref[...] = jnp.zeros_like(acc_ref)

    B, H, tq, D = q_ref.shape
    tk = k_ref.shape[2]

    q = q_ref[...].astype(jnp.float32).reshape(B * H, tq, D)
    kk = k_ref[...].astype(jnp.float32).reshape(B * H, tk, D)
    vv = v_ref[...].astype(jnp.float32).reshape(B * H, tk, D)

    s = jnp.einsum("bqd,bkd->bqk", q, kk, preferred_element_type=jnp.float32) * scale
    s = s.reshape(B, H, tq, tk)

    # Causal mask, additive -10000 bias exactly like the reference.
    row = qi * tq + lax.broadcasted_iota(jnp.int32, (tq, tk), 0)
    col = ki * tk + lax.broadcasted_iota(jnp.int32, (tq, tk), 1)
    s = jnp.where((col <= row)[None, None, :, :], s, -10000.0)

    # Softmax over the HEAD axis (dim=1) -- faithful to nn.Softmax(dim=1).
    m = jnp.max(s, axis=1, keepdims=True)
    e = jnp.exp(s - m)
    p = e / jnp.sum(e, axis=1, keepdims=True)

    p = p.reshape(B * H, tq, tk)
    y = jnp.einsum("bqk,bkd->bqd", p, vv, preferred_element_type=jnp.float32)
    acc_ref[...] += y.reshape(B, H, tq, D)

    @pl.when(ki == pl.num_programs(1) - 1)
    def _():
        o_ref[...] = acc_ref[...].astype(o_ref.dtype)


def _head_merge_dense_res_kernel(a_ref, w_ref, b_ref, r_ref, o_ref, acc_ref):
    # Contraction over the head axis (grid axis 1): out = res + b + sum_h a_h @ W_h.
    h = pl.program_id(1)

    @pl.when(h == 0)
    def _():
        acc_ref[...] = r_ref[...].astype(jnp.float32) + b_ref[...][None].astype(jnp.float32)

    B = a_ref.shape[0]
    w = w_ref[...].astype(jnp.float32)           # [D, E]
    for b in range(B):                            # small static batch loop
        acc_ref[b] += jnp.dot(a_ref[b].astype(jnp.float32), w,
                              preferred_element_type=jnp.float32)

    @pl.when(h == pl.num_programs(1) - 1)
    def _():
        o_ref[...] = acc_ref[...].astype(o_ref.dtype)


# ----------------------------- pallas_call wrappers -------------------------

def layernorm(x2d, gamma, beta, tm_target=256):
    M, E = x2d.shape
    tm = _pick_tile(M, tm_target)
    return pl.pallas_call(
        _layernorm_kernel,
        out_shape=jax.ShapeDtypeStruct((M, E), x2d.dtype),
        grid=(M // tm,),
        in_specs=[
            pl.BlockSpec((tm, E), lambda i: (i, 0)),
            pl.BlockSpec((1, E), lambda i: (0, 0)),
            pl.BlockSpec((1, E), lambda i: (0, 0)),
        ],
        out_specs=pl.BlockSpec((tm, E), lambda i: (i, 0)),
        compiler_params=_mosaic_params(("parallel",)),
    )(x2d, gamma.reshape(1, -1), beta.reshape(1, -1))


def ln_linear(x2d, gamma, beta, w, b, activation="none",
              tm_target=256, tn_target=256):
    M, K = x2d.shape
    N = w.shape[1]
    tm = _pick_tile(M, tm_target)
    tn = _pick_tile(N, tn_target)
    kernel = functools.partial(_ln_matmul_kernel, activation=activation)
    return pl.pallas_call(
        kernel,
        out_shape=jax.ShapeDtypeStruct((M, N), x2d.dtype),
        grid=(M // tm, N // tn),
        in_specs=[
            pl.BlockSpec((tm, K), lambda i, j: (i, 0)),
            pl.BlockSpec((1, K), lambda i, j: (0, 0)),
            pl.BlockSpec((1, K), lambda i, j: (0, 0)),
            pl.BlockSpec((K, tn), lambda i, j: (0, j)),
            pl.BlockSpec((1, tn), lambda i, j: (0, j)),
        ],
        out_specs=pl.BlockSpec((tm, tn), lambda i, j: (i, j)),
        compiler_params=_mosaic_params(("parallel", "parallel")),
    )(x2d, gamma.reshape(1, -1), beta.reshape(1, -1), w, b.reshape(1, -1))


def linear_res(x2d, w, b, res2d, tm_target=256, tn_target=256, tk_target=512):
    M, K = x2d.shape
    N = w.shape[1]
    tm = _pick_tile(M, tm_target)
    tn = _pick_tile(N, tn_target)
    tk = _pick_tile(K, tk_target)
    return pl.pallas_call(
        _matmul_res_kernel,
        out_shape=jax.ShapeDtypeStruct((M, N), x2d.dtype),
        grid=(M // tm, N // tn, K // tk),
        in_specs=[
            pl.BlockSpec((tm, tk), lambda i, j, k: (i, k)),
            pl.BlockSpec((tk, tn), lambda i, j, k: (k, j)),
            pl.BlockSpec((1, tn), lambda i, j, k: (0, j)),
            pl.BlockSpec((tm, tn), lambda i, j, k: (i, j)),
        ],
        out_specs=pl.BlockSpec((tm, tn), lambda i, j, k: (i, j)),
        scratch_shapes=[pltpu.VMEM((tm, tn), jnp.float32)],
        compiler_params=_mosaic_params(("parallel", "parallel", "arbitrary")),
    )(x2d, w, b.reshape(1, -1), res2d)


def attn_core(q, k, v, tq_target=256, tk_target=256):
    B, H, S, D = q.shape
    tq = _pick_tile(S, tq_target)
    tk = _pick_tile(S, tk_target)
    kernel = functools.partial(_attn_core_kernel, scale=1.0 / math.sqrt(D))
    return pl.pallas_call(
        kernel,
        out_shape=jax.ShapeDtypeStruct((B, H, S, D), q.dtype),
        grid=(S // tq, S // tk),
        in_specs=[
            pl.BlockSpec((B, H, tq, D), lambda qi, ki: (0, 0, qi, 0)),
            pl.BlockSpec((B, H, tk, D), lambda qi, ki: (0, 0, ki, 0)),
            pl.BlockSpec((B, H, tk, D), lambda qi, ki: (0, 0, ki, 0)),
        ],
        out_specs=pl.BlockSpec((B, H, tq, D), lambda qi, ki: (0, 0, qi, 0)),
        scratch_shapes=[pltpu.VMEM((B, H, tq, D), jnp.float32)],
        compiler_params=_mosaic_params(("parallel", "arbitrary")),
    )(q, k, v)


def head_merge_dense_res(a, w, b, res, tq_target=256):
    # a: [B, H, S, D]  w: [E_in=H*D, E]  res: [B, S, E]  ->  [B, S, E]
    B, H, S, D = a.shape
    E = w.shape[1]
    tq = _pick_tile(S, tq_target)
    w3 = w.reshape(H, D, E)   # free metadata reshape (row index = h*D + d)
    return pl.pallas_call(
        _head_merge_dense_res_kernel,
        out_shape=jax.ShapeDtypeStruct((B, S, E), res.dtype),
        grid=(S // tq, H),
        in_specs=[
            pl.BlockSpec((B, None, tq, D), lambda qi, h: (0, h, qi, 0)),
            pl.BlockSpec((None, D, E), lambda qi, h: (h, 0, 0)),
            pl.BlockSpec((1, E), lambda qi, h: (0, 0)),
            pl.BlockSpec((B, tq, E), lambda qi, h: (0, qi, 0)),
        ],
        out_specs=pl.BlockSpec((B, tq, E), lambda qi, h: (0, qi, 0)),
        scratch_shapes=[pltpu.VMEM((B, tq, E), jnp.float32)],
        compiler_params=_mosaic_params(("parallel", "arbitrary")),
    )(a, w3, b.reshape(1, -1), res)


# ----------------------------- model forward --------------------------------

def transformer_forward(x, params, num_heads):
    B, S, E = x.shape
    D = E // num_heads
    cached_kvs = []
    for p in params["blocks"]:
        x2d = x.reshape(B * S, E)

        # --- attention sub-block ---
        # fused LayerNorm1 + QKV projection
        qkv = ln_linear(x2d, p["ln1_g"], p["ln1_b"], p["qkv_w"], p["qkv_b"])
        qkv = qkv.reshape(B, S, 3, num_heads, D)
        q = qkv[:, :, 0].transpose(0, 2, 1, 3)          # [B, H, S, D]
        k = qkv[:, :, 1].transpose(0, 2, 1, 3)
        v = qkv[:, :, 2].transpose(0, 2, 1, 3)
        cached_kvs.append(jnp.stack([k, v], axis=1))    # [B, 2, H, S, D]

        a = attn_core(q, k, v)                          # [B, H, S, D]
        # fused head-merge + dense projection + residual add (lane-dense out)
        x = head_merge_dense_res(a, p["dense_w"], p["dense_b"], x)

        # --- MLP sub-block ---
        x2d = x.reshape(B * S, E)
        # fused LayerNorm2 + fc1 + exact GELU
        h = ln_linear(x2d, p["ln2_g"], p["ln2_b"], p["fc1_w"], p["fc1_b"],
                      activation="gelu")
        # fc2 + residual (K-tiled, f32 accumulator)
        x = linear_res(h, p["fc2_w"], p["fc2_b"], x2d).reshape(B, S, E)

    x2d = x.reshape(B * S, E)
    x = layernorm(x2d, params["lnf_g"], params["lnf_b"]).reshape(B, S, E)
    return x, jnp.stack(cached_kvs)                     # [L, B, 2, H, S, D]


# ----------------------------- pure-JAX reference ---------------------------

def _reference_forward(x, params, num_heads):
    B, S, E = x.shape
    D = E // num_heads

    def ln(t, g, b):
        m = jnp.mean(t, axis=-1, keepdims=True)
        v = jnp.mean((t - m) ** 2, axis=-1, keepdims=True)
        return (t - m) / jnp.sqrt(v + 1e-5) * g + b

    cached = []
    for p in params["blocks"]:
        h = ln(x, p["ln1_g"], p["ln1_b"])
        qkv = h @ p["qkv_w"] + p["qkv_b"]
        q, k, v = jnp.split(qkv, 3, axis=2)
        sh = lambda t: t.reshape(B, S, num_heads, D).transpose(0, 2, 1, 3)
        q, k, v = sh(q), sh(k), sh(v)
        cached.append(jnp.stack([k, v], axis=1))
        s = jnp.einsum("bhsd,bhtd->bhst", q, k) / math.sqrt(D)
        mask = jnp.tril(jnp.ones((S, S), jnp.float32))[None, None]
        s = s * mask - 10000.0 * (1.0 - mask)
        p_attn = jax.nn.softmax(s, axis=1)
        y = jnp.einsum("bhst,bhtd->bhsd", p_attn, v)
        y = y.transpose(0, 2, 1, 3).reshape(B, S, E)
        x = x + (y @ p["dense_w"] + p["dense_b"])
        z = ln(x, p["ln2_g"], p["ln2_b"])
        pre = z @ p["fc1_w"] + p["fc1_b"]
        hmid = 0.5 * pre * (1.0 + lax.erf(pre / math.sqrt(2.0)))
        x = x + (hmid @ p["fc2_w"] + p["fc2_b"])
    x = ln(x, params["lnf_g"], params["lnf_b"])
    return x, jnp.stack(cached)


# ----------------------------- params ---------------------------------------

def init_params(key, layer_size, embedding_size):
    E = embedding_size
    blocks = []
    for _ in range(layer_size):
        key, *ks = jax.random.split(key, 5)
        blocks.append(dict(
            ln1_g=jnp.ones((E,), jnp.float32),
            ln1_b=jnp.zeros((E,), jnp.float32),
            qkv_w=0.02 * jax.random.normal(ks[0], (E, 3 * E), jnp.float32),
            qkv_b=jnp.zeros((3 * E,), jnp.float32),
            dense_w=0.02 * jax.random.normal(ks[1], (E, E), jnp.float32),
            dense_b=jnp.zeros((E,), jnp.float32),
            ln2_g=jnp.ones((E,), jnp.float32),
            ln2_b=jnp.zeros((E,), jnp.float32),
            fc1_w=0.02 * jax.random.normal(ks[2], (E, 4 * E), jnp.float32),
            fc1_b=jnp.zeros((4 * E,), jnp.float32),
            fc2_w=0.02 * jax.random.normal(ks[3], (4 * E, E), jnp.float32),
            fc2_b=jnp.zeros((E,), jnp.float32),
        ))
    return dict(blocks=blocks,
                lnf_g=jnp.ones((E,), jnp.float32),
                lnf_b=jnp.zeros((E,), jnp.float32))


# ----------------------------- main ------------------------------------------

if __name__ == "__main__":
    LAYERS, B, S, E, HEADS = 2, 2, 8, 32, 4

    key = jax.random.PRNGKey(0)
    key, kx, kp = jax.random.split(key, 3)
    x = jax.random.normal(kx, (B, S, E), jnp.float32)
    params = init_params(kp, LAYERS, E)

    fwd = jax.jit(functools.partial(transformer_forward, num_heads=HEADS))
    out, cached_kvs = fwd(x, params)
    out = jax.block_until_ready(out)
    cached_kvs = jax.block_until_ready(cached_kvs)

    ref_out, ref_kvs = _reference_forward(x, params, HEADS)
    assert out.shape == (B, S, E)
    assert cached_kvs.shape == (LAYERS, B, 2, HEADS, S, E // HEADS)
    assert jnp.allclose(out, ref_out, rtol=2e-4, atol=2e-4), \
        float(jnp.max(jnp.abs(out - ref_out)))
    assert jnp.allclose(cached_kvs, ref_kvs, rtol=2e-4, atol=2e-4)

    print("KERNEL_OK")
</pallas_src>

<mosaic_0001>
module attributes {stable_mosaic.version = 11 : i64} {
  func.func @_ln_matmul_kernel(%arg0: i32, %arg1: i32, %arg2: memref<16x32xf32, #tpu.memory_space<vmem>>, %arg3: memref<1x32xf32, #tpu.memory_space<vmem>>, %arg4: memref<1x32xf32, #tpu.memory_space<vmem>>, %arg5: memref<32x96xf32, #tpu.memory_space<vmem>>, %arg6: memref<1x96xf32, #tpu.memory_space<vmem>>, %arg7: memref<16x96xf32, #tpu.memory_space<vmem>>) attributes {dimension_semantics = [#tpu.dimension_semantics<parallel>, #tpu.dimension_semantics<parallel>], iteration_bounds = array<i64: 1, 1>, scalar_prefetch = 0 : i64, scratch_operands = 0 : i64, tpu.core_type = #tpu.core_type<tc>, window_params = [{transform_indices = @transform_0, window_bounds = array<i64: 16, 32>}, {pipeline_mode = #tpu.pipeline_mode<synchronous>, transform_indices = @transform_1, window_bounds = array<i64: 1, 32>}, {pipeline_mode = #tpu.pipeline_mode<synchronous>, transform_indices = @transform_2, window_bounds = array<i64: 1, 32>}, {transform_indices = @transform_3, window_bounds = array<i64: 32, 96>}, {transform_indices = @transform_4, window_bounds = array<i64: 1, 96>}, {transform_indices = @transform_5, window_bounds = array<i64: 16, 96>}]} {
    %c0 = arith.constant 0 : index
    %c0_0 = arith.constant 0 : index
    %0 = vector.load %arg2[%c0, %c0_0] : memref<16x32xf32, #tpu.memory_space<vmem>>, vector<16x32xf32>
    %cst = arith.constant dense<0.000000e+00> : vector<16xf32>
    %1 = vector.multi_reduction <add>, %0, %cst [1] : vector<16x32xf32> to vector<16xf32>
    %2 = vector.shape_cast %1 : vector<16xf32> to vector<16x1xf32>
    %cst_1 = arith.constant 3.200000e+01 : f32
    %3 = vector.broadcast %cst_1 : f32 to vector<16x1xf32>
    %4 = arith.divf %2, %3 : vector<16x1xf32>
    %5 = vector.broadcast %4 : vector<16x1xf32> to vector<16x32xf32>
    %6 = arith.subf %0, %5 : vector<16x32xf32>
    %7 = arith.mulf %6, %6 : vector<16x32xf32>
    %cst_2 = arith.constant dense<0.000000e+00> : vector<16xf32>
    %8 = vector.multi_reduction <add>, %7, %cst_2 [1] : vector<16x32xf32> to vector<16xf32>
    %9 = vector.shape_cast %8 : vector<16xf32> to vector<16x1xf32>
    %cst_3 = arith.constant 3.200000e+01 : f32
    %10 = vector.broadcast %cst_3 : f32 to vector<16x1xf32>
    %11 = arith.divf %9, %10 : vector<16x1xf32>
    %12 = vector.broadcast %4 : vector<16x1xf32> to vector<16x32xf32>
    %13 = arith.subf %0, %12 : vector<16x32xf32>
    %cst_4 = arith.constant 9.99999974E-6 : f32
    %14 = vector.broadcast %cst_4 : f32 to vector<16x1xf32>
    %15 = arith.addf %11, %14 : vector<16x1xf32>
    %16 = math.rsqrt %15 : vector<16x1xf32>
    %17 = vector.broadcast %16 : vector<16x1xf32> to vector<16x32xf32>
    %18 = arith.mulf %13, %17 : vector<16x32xf32>
    %c0_5 = arith.constant 0 : index
    %c0_6 = arith.constant 0 : index
    %19 = vector.load %arg3[%c0_5, %c0_6] : memref<1x32xf32, #tpu.memory_space<vmem>>, vector<1x32xf32>
    %20 = vector.broadcast %19 : vector<1x32xf32> to vector<16x32xf32>
    %21 = arith.mulf %18, %20 : vector<16x32xf32>
    %c0_7 = arith.constant 0 : index
    %c0_8 = arith.constant 0 : index
    %22 = vector.load %arg4[%c0_7, %c0_8] : memref<1x32xf32, #tpu.memory_space<vmem>>, vector<1x32xf32>
    %23 = vector.broadcast %22 : vector<1x32xf32> to vector<16x32xf32>
    %24 = arith.addf %21, %23 : vector<16x32xf32>
    %c0_9 = arith.constant 0 : index
    %c0_10 = arith.constant 0 : index
    %25 = vector.load %arg5[%c0_9, %c0_10] : memref<32x96xf32, #tpu.memory_space<vmem>>, vector<32x96xf32>
    %cst_11 = arith.constant dense<0.000000e+00> : vector<16x96xf32>
    %26 = tpu.matmul %24, %25, %cst_11 {dimension_numbers = #tpu.dot_dimension_numbers<[1], [0], [0], [1], [0, 0, 1, 1], [], []>} : vector<16x32xf32>, vector<32x96xf32>, vector<16x96xf32> -> vector<16x96xf32>
    %c0_12 = arith.constant 0 : index
    %c0_13 = arith.constant 0 : index
    %27 = vector.load %arg6[%c0_12, %c0_13] : memref<1x96xf32, #tpu.memory_space<vmem>>, vector<1x96xf32>
    %28 = vector.broadcast %27 : vector<1x96xf32> to vector<16x96xf32>
    %29 = arith.addf %26, %28 : vector<16x96xf32>
    %c0_14 = arith.constant 0 : index
    %c0_15 = arith.constant 0 : index
    %30 = vector.load %arg7[%c0_14, %c0_15] : memref<16x96xf32, #tpu.memory_space<vmem>>, vector<16x96xf32>
    tpu.vector_store %arg7[%c0_14, %c0_15], %29 {strides = array<i32>} : memref<16x96xf32, #tpu.memory_space<vmem>>, vector<16x96xf32>,
    return
  }
  func.func @transform_0(%arg0: i32, %arg1: i32) -> (i32, i32) {
    %c0_i32 = arith.constant 0 : i32
    %c0_i32_0 = arith.constant 0 : i32
    return %arg0, %c0_i32 : i32, i32
  }
  func.func @transform_1(%arg0: i32, %arg1: i32) -> (i32, i32) {
    %c0_i32 = arith.constant 0 : i32
    %c0_i32_0 = arith.constant 0 : i32
    %c0_i32_1 = arith.constant 0 : i32
    return %c0_i32, %c0_i32_0 : i32, i32
  }
  func.func @transform_2(%arg0: i32, %arg1: i32) -> (i32, i32) {
    %c0_i32 = arith.constant 0 : i32
    %c0_i32_0 = arith.constant 0 : i32
    %c0_i32_1 = arith.constant 0 : i32
    return %c0_i32, %c0_i32_0 : i32, i32
  }
  func.func @transform_3(%arg0: i32, %arg1: i32) -> (i32, i32) {
    %c0_i32 = arith.constant 0 : i32
    %c0_i32_0 = arith.constant 0 : i32
    return %c0_i32, %arg1 : i32, i32
  }
  func.func @transform_4(%arg0: i32, %arg1: i32) -> (i32, i32) {
    %c0_i32 = arith.constant 0 : i32
    %c0_i32_0 = arith.constant 0 : i32
    return %c0_i32, %arg1 : i32, i32
  }
  func.func @transform_5(%arg0: i32, %arg1: i32) -> (i32, i32) {
    %c0_i32 = arith.constant 0 : i32
    return %arg0, %arg1 : i32, i32
  }
}

module attributes {stable_mosaic.version = 11 : i64} {
  func.func @_ln_matmul_kernel(%arg0: i32, %arg1: i32, %arg2: memref<16x32xf32, #tpu.memory_space<vmem>>, %arg3: memref<1x32xf32, #tpu.memory_space<vmem>>, %arg4: memref<1x32xf32, #tpu.memory_space<vmem>>, %arg5: memref<32x128xf32, #tpu.memory_space<vmem>>, %arg6: memref<1x128xf32, #tpu.memory_space<vmem>>, %arg7: memref<16x128xf32, #tpu.memory_space<vmem>>) attributes {dimension_semantics = [#tpu.dimension_semantics<parallel>, #tpu.dimension_semantics<parallel>], iteration_bounds = array<i64: 1, 1>, scalar_prefetch = 0 : i64, scratch_operands = 0 : i64, tpu.core_type = #tpu.core_type<tc>, window_params = [{transform_indices = @transform_0, window_bounds = array<i64: 16, 32>}, {pipeline_mode = #tpu.pipeline_mode<synchronous>, transform_indices = @transform_1, window_bounds = array<i64: 1, 32>}, {pipeline_mode = #tpu.pipeline_mode<synchronous>, transform_indices = @transform_2, window_bounds = array<i64: 1, 32>}, {transform_indices = @transform_3, window_bounds = array<i64: 32, 128>}, {transform_indices = @transform_4, window_bounds = array<i64: 1, 128>}, {transform_indices = @transform_5, window_bounds = array<i64: 16, 128>}]} {
    %c0 = arith.constant 0 : index
    %c0_0 = arith.constant 0 : index
    %0 = vector.load %arg2[%c0, %c0_0] : memref<16x32xf32, #tpu.memory_space<vmem>>, vector<16x32xf32>
    %cst = arith.constant dense<0.000000e+00> : vector<16xf32>
    %1 = vector.multi_reduction <add>, %0, %cst [1] : vector<16x32xf32> to vector<16xf32>
    %2 = vector.shape_cast %1 : vector<16xf32> to vector<16x1xf32>
    %cst_1 = arith.constant 3.200000e+01 : f32
    %3 = vector.broadcast %cst_1 : f32 to vector<16x1xf32>
    %4 = arith.divf %2, %3 : vector<16x1xf32>
    %5 = vector.broadcast %4 : vector<16x1xf32> to vector<16x32xf32>
    %6 = arith.subf %0, %5 : vector<16x32xf32>
    %7 = arith.mulf %6, %6 : vector<16x32xf32>
    %cst_2 = arith.constant dense<0.000000e+00> : vector<16xf32>
    %8 = vector.multi_reduction <add>, %7, %cst_2 [1] : vector<16x32xf32> to vector<16xf32>
    %9 = vector.shape_cast %8 : vector<16xf32> to vector<16x1xf32>
    %cst_3 = arith.constant 3.200000e+01 : f32
    %10 = vector.broadcast %cst_3 : f32 to vector<16x1xf32>
    %11 = arith.divf %9, %10 : vector<16x1xf32>
    %12 = vector.broadcast %4 : vector<16x1xf32> to vector<16x32xf32>
    %13 = arith.subf %0, %12 : vector<16x32xf32>
    %cst_4 = arith.constant 9.99999974E-6 : f32
    %14 = vector.broadcast %cst_4 : f32 to vector<16x1xf32>
    %15 = arith.addf %11, %14 : vector<16x1xf32>
    %16 = math.rsqrt %15 : vector<16x1xf32>
    %17 = vector.broadcast %16 : vector<16x1xf32> to vector<16x32xf32>
    %18 = arith.mulf %13, %17 : vector<16x32xf32>
    %c0_5 = arith.constant 0 : index
    %c0_6 = arith.constant 0 : index
    %19 = vector.load %arg3[%c0_5, %c0_6] : memref<1x32xf32, #tpu.memory_space<vmem>>, vector<1x32xf32>
    %20 = vector.broadcast %19 : vector<1x32xf32> to vector<16x32xf32>
    %21 = arith.mulf %18, %20 : vector<16x32xf32>
    %c0_7 = arith.constant 0 : index
    %c0_8 = arith.constant 0 : index
    %22 = vector.load %arg4[%c0_7, %c0_8] : memref<1x32xf32, #tpu.memory_space<vmem>>, vector<1x32xf32>
    %23 = vector.broadcast %22 : vector<1x32xf32> to vector<16x32xf32>
    %24 = arith.addf %21, %23 : vector<16x32xf32>
    %c0_9 = arith.constant 0 : index
    %c0_10 = arith.constant 0 : index
    %25 = vector.load %arg5[%c0_9, %c0_10] : memref<32x128xf32, #tpu.memory_space<vmem>>, vector<32x128xf32>
    %cst_11 = arith.constant dense<0.000000e+00> : vector<16x128xf32>
    %26 = tpu.matmul %24, %25, %cst_11 {dimension_numbers = #tpu.dot_dimension_numbers<[1], [0], [0], [1], [0, 0, 1, 1], [], []>} : vector<16x32xf32>, vector<32x128xf32>, vector<16x128xf32> -> vector<16x128xf32>
    %c0_12 = arith.constant 0 : index
    %c0_13 = arith.constant 0 : index
    %27 = vector.load %arg6[%c0_12, %c0_13] : memref<1x128xf32, #tpu.memory_space<vmem>>, vector<1x128xf32>
    %28 = vector.broadcast %27 : vector<1x128xf32> to vector<16x128xf32>
    %29 = arith.addf %26, %28 : vector<16x128xf32>
    %cst_14 = arith.constant 5.000000e-01 : f32
    %30 = vector.broadcast %cst_14 : f32 to vector<16x128xf32>
    %31 = arith.mulf %30, %29 : vector<16x128xf32>
    %cst_15 = arith.constant 0.707106769 : f32
    %32 = vector.broadcast %cst_15 : f32 to vector<16x128xf32>
    %33 = arith.mulf %29, %32 : vector<16x128xf32>
    %34 = math.erf %33 : vector<16x128xf32>
    %cst_16 = arith.constant 1.000000e+00 : f32
    %35 = vector.broadcast %cst_16 : f32 to vector<16x128xf32>
    %36 = arith.addf %35, %34 : vector<16x128xf32>
    %37 = arith.mulf %31, %36 : vector<16x128xf32>
    %c0_17 = arith.constant 0 : index
    %c0_18 = arith.constant 0 : index
    %38 = vector.load %arg7[%c0_17, %c0_18] : memref<16x128xf32, #tpu.memory_space<vmem>>, vector<16x128xf32>
    tpu.vector_store %arg7[%c0_17, %c0_18], %37 {strides = array<i32>} : memref<16x128xf32, #tpu.memory_space<vmem>>, vector<16x128xf32>,
    return
  }
  func.func @transform_0(%arg0: i32, %arg1: i32) -> (i32, i32) {
    %c0_i32 = arith.constant 0 : i32
    %c0_i32_0 = arith.constant 0 : i32
    return %arg0, %c0_i32 : i32, i32
  }
  func.func @transform_1(%arg0: i32, %arg1: i32) -> (i32, i32) {
    %c0_i32 = arith.constant 0 : i32
    %c0_i32_0 = arith.constant 0 : i32
    %c0_i32_1 = arith.constant 0 : i32
    return %c0_i32, %c0_i32_0 : i32, i32
  }
  func.func @transform_2(%arg0: i32, %arg1: i32) -> (i32, i32) {
    %c0_i32 = arith.constant 0 : i32
    %c0_i32_0 = arith.constant 0 : i32
    %c0_i32_1 = arith.constant 0 : i32
    return %c0_i32, %c0_i32_0 : i32, i32
  }
  func.func @transform_3(%arg0: i32, %arg1: i32) -> (i32, i32) {
    %c0_i32 = arith.constant 0 : i32
    %c0_i32_0 = arith.constant 0 : i32
    return %c0_i32, %arg1 : i32, i32
  }
  func.func @transform_4(%arg0: i32, %arg1: i32) -> (i32, i32) {
    %c0_i32 = arith.constant 0 : i32
    %c0_i32_0 = arith.constant 0 : i32
    return %c0_i32, %arg1 : i32, i32
  }
  func.func @transform_5(%arg0: i32, %arg1: i32) -> (i32, i32) {
    %c0_i32 = arith.constant 0 : i32
    return %arg0, %arg1 : i32, i32
  }
}

module attributes {stable_mosaic.version = 11 : i64} {
  func.func @_head_merge_dense_res_kernel(%arg0: i32, %arg1: i32, %arg2: memref<2x1x8x8xf32, #tpu.memory_space<vmem>>, %arg3: memref<1x8x32xf32, #tpu.memory_space<vmem>>, %arg4: memref<1x32xf32, #tpu.memory_space<vmem>>, %arg5: memref<2x8x32xf32, #tpu.memory_space<vmem>>, %arg6: memref<2x8x32xf32, #tpu.memory_space<vmem>>, %arg7: memref<2x8x32xf32, #tpu.memory_space<vmem>>) attributes {dimension_semantics = [#tpu.dimension_semantics<parallel>, #tpu.dimension_semantics<arbitrary>], iteration_bounds = array<i64: 1, 4>, scalar_prefetch = 0 : i64, scratch_operands = 1 : i64, tpu.core_type = #tpu.core_type<tc>, window_params = [{transform_indices = @transform_0, window_bounds = array<i64: 2, 1, 8, 8>}, {transform_indices = @transform_1, window_bounds = array<i64: 1, 8, 32>}, {pipeline_mode = #tpu.pipeline_mode<synchronous>, transform_indices = @transform_2, window_bounds = array<i64: 1, 32>}, {transform_indices = @transform_3, window_bounds = array<i64: 2, 8, 32>}, {transform_indices = @transform_4, window_bounds = array<i64: 2, 8, 32>}]} {
    %c0_i32 = arith.constant 0 : i32
    %0 = arith.cmpi eq, %arg1, %c0_i32 : i32
    %1 = arith.extui %0 : i1 to i32
    %c0_i32_0 = arith.constant 0 : i32
    %2 = arith.cmpi ne, %1, %c0_i32_0 : i32
    scf.if %2 {
      %c0_24 = arith.constant 0 : index
      %c0_25 = arith.constant 0 : index
      %c0_26 = arith.constant 0 : index
      %26 = vector.load %arg5[%c0_24, %c0_25, %c0_26] : memref<2x8x32xf32, #tpu.memory_space<vmem>>, vector<2x8x32xf32>
      %c0_27 = arith.constant 0 : index
      %c0_28 = arith.constant 0 : index
      %27 = vector.load %arg4[%c0_27, %c0_28] : memref<1x32xf32, #tpu.memory_space<vmem>>, vector<1x32xf32>
      %28 = vector.shape_cast %27 : vector<1x32xf32> to vector<1x1x32xf32>
      %29 = vector.broadcast %28 : vector<1x1x32xf32> to vector<2x8x32xf32>
      %30 = arith.addf %26, %29 : vector<2x8x32xf32>
      %c0_29 = arith.constant 0 : index
      %c0_30 = arith.constant 0 : index
      %c0_31 = arith.constant 0 : index
      %31 = vector.load %arg7[%c0_29, %c0_30, %c0_31] : memref<2x8x32xf32, #tpu.memory_space<vmem>>, vector<2x8x32xf32>
      tpu.vector_store %arg7[%c0_29, %c0_30, %c0_31], %30 {strides = array<i32>} : memref<2x8x32xf32, #tpu.memory_space<vmem>>, vector<2x8x32xf32>,
    } else {
    }
    %c0 = arith.constant 0 : index
    %c0_1 = arith.constant 0 : index
    %c0_2 = arith.constant 0 : index
    %3 = vector.load %arg3[%c0, %c0_1, %c0_2] : memref<1x8x32xf32, #tpu.memory_space<vmem>>, vector<1x8x32xf32>
    %4 = vector.shape_cast %3 : vector<1x8x32xf32> to vector<8x32xf32>
    %c0_3 = arith.constant 0 : index
    %c0_4 = arith.constant 0 : index
    %c0_5 = arith.constant 0 : index
    %5 = vector.load %arg7[%c0_3, %c0_4, %c0_5] : memref<2x8x32xf32, #tpu.memory_space<vmem>>, vector<1x8x32xf32>
    %6 = vector.shape_cast %5 : vector<1x8x32xf32> to vector<8x32xf32>
    %c0_6 = arith.constant 0 : index
    %c0_7 = arith.constant 0 : index
    %c0_8 = arith.constant 0 : index
    %c0_9 = arith.constant 0 : index
    %7 = vector.load %arg2[%c0_6, %c0_7, %c0_8, %c0_9] : memref<2x1x8x8xf32, #tpu.memory_space<vmem>>, vector<1x1x8x8xf32>
    %8 = vector.shape_cast %7 : vector<1x1x8x8xf32> to vector<8x8xf32>
    %cst = arith.constant dense<0.000000e+00> : vector<8x32xf32>
    %9 = tpu.matmul %8, %4, %cst {dimension_numbers = #tpu.dot_dimension_numbers<[1], [0], [0], [1], [0, 0, 1, 1], [], []>} : vector<8x8xf32>, vector<8x32xf32>, vector<8x32xf32> -> vector<8x32xf32>
    %10 = arith.addf %6, %9 : vector<8x32xf32>
    %c0_10 = arith.constant 0 : index
    %c0_11 = arith.constant 0 : index
    %c0_12 = arith.constant 0 : index
    %11 = vector.load %arg7[%c0_10, %c0_11, %c0_12] : memref<2x8x32xf32, #tpu.memory_space<vmem>>, vector<1x8x32xf32>
    %12 = vector.shape_cast %11 : vector<1x8x32xf32> to vector<8x32xf32>
    %13 = vector.shape_cast %10 : vector<8x32xf32> to vector<1x8x32xf32>
    tpu.vector_store %arg7[%c0_10, %c0_11, %c0_12], %13 {strides = array<i32>} : memref<2x8x32xf32, #tpu.memory_space<vmem>>, vector<1x8x32xf32>,
    %c1 = arith.constant 1 : index
    %c0_13 = arith.constant 0 : index
    %c0_14 = arith.constant 0 : index
    %14 = vector.load %arg7[%c1, %c0_13, %c0_14] : memref<2x8x32xf32, #tpu.memory_space<vmem>>, vector<1x8x32xf32>
    %15 = vector.shape_cast %14 : vector<1x8x32xf32> to vector<8x32xf32>
    %c1_15 = arith.constant 1 : index
    %c0_16 = arith.constant 0 : index
    %c0_17 = arith.constant 0 : index
    %c0_18 = arith.constant 0 : index
    %16 = vector.load %arg2[%c1_15, %c0_16, %c0_17, %c0_18] : memref<2x1x8x8xf32, #tpu.memory_space<vmem>>, vector<1x1x8x8xf32>
    %17 = vector.shape_cast %16 : vector<1x1x8x8xf32> to vector<8x8xf32>
    %cst_19 = arith.constant dense<0.000000e+00> : vector<8x32xf32>
    %18 = tpu.matmul %17, %4, %cst_19 {dimension_numbers = #tpu.dot_dimension_numbers<[1], [0], [0], [1], [0, 0, 1, 1], [], []>} : vector<8x8xf32>, vector<8x32xf32>, vector<8x32xf32> -> vector<8x32xf32>
    %19 = arith.addf %15, %18 : vector<8x32xf32>
    %c1_20 = arith.constant 1 : index
    %c0_21 = arith.constant 0 : index
    %c0_22 = arith.constant 0 : index
    %20 = vector.load %arg7[%c1_20, %c0_21, %c0_22] : memref<2x8x32xf32, #tpu.memory_space<vmem>>, vector<1x8x32xf32>
    %21 = vector.shape_cast %20 : vector<1x8x32xf32> to vector<8x32xf32>
    %22 = vector.shape_cast %19 : vector<8x32xf32> to vector<1x8x32xf32>
    tpu.vector_store %arg7[%c1_20, %c0_21, %c0_22], %22 {strides = array<i32>} : memref<2x8x32xf32, #tpu.memory_space<vmem>>, vector<1x8x32xf32>,
    %c3_i32 = arith.constant 3 : i32
    %23 = arith.cmpi eq, %arg1, %c3_i32 : i32
    %24 = arith.extui %23 : i1 to i32
    %c0_i32_23 = arith.constant 0 : i32
    %25 = arith.cmpi ne, %24, %c0_i32_23 : i32
    scf.if %25 {
      %c0_24 = arith.constant 0 : index
      %c0_25 = arith.constant 0 : index
      %c0_26 = arith.constant 0 : index
      %26 = vector.load %arg7[%c0_24, %c0_25, %c0_26] : memref<2x8x32xf32, #tpu.memory_space<vmem>>, vector<2x8x32xf32>
      %c0_27 = arith.constant 0 : index
      %c0_28 = arith.constant 0 : index
      %c0_29 = arith.constant 0 : index
      %27 = vector.load %arg6[%c0_27, %c0_28, %c0_29] : memref<2x8x32xf32, #tpu.memory_space<vmem>>, vector<2x8x32xf32>
      tpu.vector_store %arg6[%c0_27, %c0_28, %c0_29], %26 {strides = array<i32>} : memref<2x8x32xf32, #tpu.memory_space<vmem>>, vector<2x8x32xf32>,
    } else {
    }
    return
  }
  func.func @transform_0(%arg0: i32, %arg1: i32) -> (i32, i32, i32, i32) {
    %c0_i32 = arith.constant 0 : i32
    %c0_i32_0 = arith.constant 0 : i32
    %c0_i32_1 = arith.constant 0 : i32
    return %c0_i32, %arg1, %arg0, %c0_i32_0 : i32, i32, i32, i32
  }
  func.func @transform_1(%arg0: i32, %arg1: i32) -> (i32, i32, i32) {
    %c0_i32 = arith.constant 0 : i32
    %c0_i32_0 = arith.constant 0 : i32
    %c0_i32_1 = arith.constant 0 : i32
    return %arg1, %c0_i32, %c0_i32_0 : i32, i32, i32
  }
  func.func @transform_2(%arg0: i32, %arg1: i32) -> (i32, i32) {
    %c0_i32 = arith.constant 0 : i32
    %c0_i32_0 = arith.constant 0 : i32
    %c0_i32_1 = arith.constant 0 : i32
    return %c0_i32, %c0_i32_0 : i32, i32
  }
  func.func @transform_3(%arg0: i32, %arg1: i32) -> (i32, i32, i32) {
    %c0_i32 = arith.constant 0 : i32
    %c0_i32_0 = arith.constant 0 : i32
    %c0_i32_1 = arith.constant 0 : i32
    return %c0_i32, %arg0, %c0_i32_0 : i32, i32, i32
  }
  func.func @transform_4(%arg0: i32, %arg1: i32) -> (i32, i32, i32) {
    %c0_i32 = arith.constant 0 : i32
    %c0_i32_0 = arith.constant 0 : i32
    %c0_i32_1 = arith.constant 0 : i32
    return %c0_i32, %arg0, %c0_i32_0 : i32, i32, i32
  }
}

module attributes {stable_mosaic.version = 11 : i64} {
  func.func @_attn_core_kernel(%arg0: i32, %arg1: i32, %arg2: memref<2x4x8x8xf32, #tpu.memory_space<vmem>>, %arg3: memref<2x4x8x8xf32, #tpu.memory_space<vmem>>, %arg4: memref<2x4x8x8xf32, #tpu.memory_space<vmem>>, %arg5: memref<2x4x8x8xf32, #tpu.memory_space<vmem>>, %arg6: memref<2x4x8x8xf32, #tpu.memory_space<vmem>>) attributes {dimension_semantics = [#tpu.dimension_semantics<parallel>, #tpu.dimension_semantics<arbitrary>], iteration_bounds = array<i64: 1, 1>, scalar_prefetch = 0 : i64, scratch_operands = 1 : i64, tpu.core_type = #tpu.core_type<tc>, window_params = [{transform_indices = @transform_0, window_bounds = array<i64: 2, 4, 8, 8>}, {transform_indices = @transform_1, window_bounds = array<i64: 2, 4, 8, 8>}, {transform_indices = @transform_2, window_bounds = array<i64: 2, 4, 8, 8>}, {transform_indices = @transform_3, window_bounds = array<i64: 2, 4, 8, 8>}]} {
    %c0_i32 = arith.constant 0 : i32
    %0 = arith.cmpi eq, %arg1, %c0_i32 : i32
    %1 = arith.extui %0 : i1 to i32
    %c0_i32_0 = arith.constant 0 : i32
    %2 = arith.cmpi ne, %1, %c0_i32_0 : i32
    scf.if %2 {
      %cst_28 = arith.constant 0.000000e+00 : f32
      %45 = vector.broadcast %cst_28 : f32 to vector<2x4x8x8xf32>
      %c0_29 = arith.constant 0 : index
      %c0_30 = arith.constant 0 : index
      %c0_31 = arith.constant 0 : index
      %c0_32 = arith.constant 0 : index
      %46 = vector.load %arg6[%c0_29, %c0_30, %c0_31, %c0_32] : memref<2x4x8x8xf32, #tpu.memory_space<vmem>>, vector<2x4x8x8xf32>
      tpu.vector_store %arg6[%c0_29, %c0_30, %c0_31, %c0_32], %45 {strides = array<i32>} : memref<2x4x8x8xf32, #tpu.memory_space<vmem>>, vector<2x4x8x8xf32>,
    } else {
    }
    %c0 = arith.constant 0 : index
    %c0_1 = arith.constant 0 : index
    %c0_2 = arith.constant 0 : index
    %c0_3 = arith.constant 0 : index
    %3 = vector.load %arg2[%c0, %c0_1, %c0_2, %c0_3] : memref<2x4x8x8xf32, #tpu.memory_space<vmem>>, vector<2x4x8x8xf32>
    %4 = vector.shape_cast %3 : vector<2x4x8x8xf32> to vector<8x8x8xf32>
    %c0_4 = arith.constant 0 : index
    %c0_5 = arith.constant 0 : index
    %c0_6 = arith.constant 0 : index
    %c0_7 = arith.constant 0 : index
    %5 = vector.load %arg3[%c0_4, %c0_5, %c0_6, %c0_7] : memref<2x4x8x8xf32, #tpu.memory_space<vmem>>, vector<2x4x8x8xf32>
    %6 = vector.shape_cast %5 : vector<2x4x8x8xf32> to vector<8x8x8xf32>
    %c0_8 = arith.constant 0 : index
    %c0_9 = arith.constant 0 : index
    %c0_10 = arith.constant 0 : index
    %c0_11 = arith.constant 0 : index
    %7 = vector.load %arg4[%c0_8, %c0_9, %c0_10, %c0_11] : memref<2x4x8x8xf32, #tpu.memory_space<vmem>>, vector<2x4x8x8xf32>
    %8 = vector.shape_cast %7 : vector<2x4x8x8xf32> to vector<8x8x8xf32>
    "tpu.trace_start"() <{level = 10 : i32, message = "bqd,bkd->bqk"}> : () -> ()
    %cst = arith.constant dense<0.000000e+00> : vector<8x8x8xf32>
    %9 = tpu.matmul %4, %6, %cst {dimension_numbers = #tpu.dot_dimension_numbers<[2], [2], [1], [1], [0, 0, 0, 1, 1, 1], [0], [0]>} : vector<8x8x8xf32>, vector<8x8x8xf32>, vector<8x8x8xf32> -> vector<8x8x8xf32>
    "tpu.trace_stop"() : () -> ()
    %cst_12 = arith.constant 0.353553385 : f32
    %10 = vector.broadcast %cst_12 : f32 to vector<8x8x8xf32>
    %11 = arith.mulf %9, %10 : vector<8x8x8xf32>
    %12 = vector.shape_cast %11 : vector<8x8x8xf32> to vector<2x4x8x8xf32>
    %c8_i32 = arith.constant 8 : i32
    %13 = arith.muli %arg0, %c8_i32 : i32
    %14 = tpu.iota {dimensions = array<i32: 0>} : vector<8x8xi32>
    %15 = vector.broadcast %13 : i32 to vector<8x8xi32>
    %16 = arith.addi %15, %14 : vector<8x8xi32>
    %c8_i32_13 = arith.constant 8 : i32
    %17 = arith.muli %arg1, %c8_i32_13 : i32
    %18 = tpu.iota {dimensions = array<i32: 1>} : vector<8x8xi32>
    %19 = vector.broadcast %17 : i32 to vector<8x8xi32>
    %20 = arith.addi %19, %18 : vector<8x8xi32>
    %21 = arith.cmpi sle, %20, %16 : vector<8x8xi32>
    %22 = vector.shape_cast %21 : vector<8x8xi1> to vector<1x1x8x8xi1>
    %cst_14 = arith.constant -1.000000e+04 : f32
    %23 = vector.shape_cast %22 : vector<1x1x8x8xi1> to vector<1x1x8x8xi1>
    %24 = vector.broadcast %23 : vector<1x1x8x8xi1> to vector<2x4x8x8xi1>
    %25 = vector.broadcast %cst_14 : f32 to vector<2x4x8x8xf32>
    %26 = arith.select %24, %12, %25 : vector<2x4x8x8xi1>, vector<2x4x8x8xf32>
    %cst_15 = arith.constant dense<0xFF800000> : vector<2x8x8xf32>
    %27 = vector.multi_reduction <maximumf>, %26, %cst_15 [1] : vector<2x4x8x8xf32> to vector<2x8x8xf32>
    %28 = vector.shape_cast %27 : vector<2x8x8xf32> to vector<2x1x8x8xf32>
    %29 = vector.broadcast %28 : vector<2x1x8x8xf32> to vector<2x4x8x8xf32>
    %30 = arith.subf %26, %29 : vector<2x4x8x8xf32>
    %31 = math.exp %30 : vector<2x4x8x8xf32>
    %cst_16 = arith.constant dense<0.000000e+00> : vector<2x8x8xf32>
    %32 = vector.multi_reduction <add>, %31, %cst_16 [1] : vector<2x4x8x8xf32> to vector<2x8x8xf32>
    %33 = vector.shape_cast %32 : vector<2x8x8xf32> to vector<2x1x8x8xf32>
    %34 = vector.broadcast %33 : vector<2x1x8x8xf32> to vector<2x4x8x8xf32>
    %35 = arith.divf %31, %34 : vector<2x4x8x8xf32>
    %36 = vector.shape_cast %35 : vector<2x4x8x8xf32> to vector<8x8x8xf32>
    "tpu.trace_start"() <{level = 10 : i32, message = "bqk,bkd->bqd"}> : () -> ()
    %cst_17 = arith.constant dense<0.000000e+00> : vector<8x8x8xf32>
    %37 = tpu.matmul %36, %8, %cst_17 {dimension_numbers = #tpu.dot_dimension_numbers<[2], [1], [1], [2], [0, 0, 0, 1, 1, 2], [0], [0]>} : vector<8x8x8xf32>, vector<8x8x8xf32>, vector<8x8x8xf32> -> vector<8x8x8xf32>
    "tpu.trace_stop"() : () -> ()
    %c0_18 = arith.constant 0 : index
    %c0_19 = arith.constant 0 : index
    %c0_20 = arith.constant 0 : index
    %c0_21 = arith.constant 0 : index
    %38 = vector.load %arg6[%c0_18, %c0_19, %c0_20, %c0_21] : memref<2x4x8x8xf32, #tpu.memory_space<vmem>>, vector<2x4x8x8xf32>
    %39 = vector.shape_cast %37 : vector<8x8x8xf32> to vector<2x4x8x8xf32>
    %40 = arith.addf %38, %39 : vector<2x4x8x8xf32>
    %c0_22 = arith.constant 0 : index
    %c0_23 = arith.constant 0 : index
    %c0_24 = arith.constant 0 : index
    %c0_25 = arith.constant 0 : index
    %41 = vector.load %arg6[%c0_22, %c0_23, %c0_24, %c0_25] : memref<2x4x8x8xf32, #tpu.memory_space<vmem>>, vector<2x4x8x8xf32>
    tpu.vector_store %arg6[%c0_22, %c0_23, %c0_24, %c0_25], %40 {strides = array<i32>} : memref<2x4x8x8xf32, #tpu.memory_space<vmem>>, vector<2x4x8x8xf32>,
    %c0_i32_26 = arith.constant 0 : i32
    %42 = arith.cmpi eq, %arg1, %c0_i32_26 : i32
    %43 = arith.extui %42 : i1 to i32
    %c0_i32_27 = arith.constant 0 : i32
    %44 = arith.cmpi ne, %43, %c0_i32_27 : i32
    scf.if %44 {
      %c0_28 = arith.constant 0 : index
      %c0_29 = arith.constant 0 : index
      %c0_30 = arith.constant 0 : index
      %c0_31 = arith.constant 0 : index
      %45 = vector.load %arg6[%c0_28, %c0_29, %c0_30, %c0_31] : memref<2x4x8x8xf32, #tpu.memory_space<vmem>>, vector<2x4x8x8xf32>
      %c0_32 = arith.constant 0 : index
      %c0_33 = arith.constant 0 : index
      %c0_34 = arith.constant 0 : index
      %c0_35 = arith.constant 0 : index
      %46 = vector.load %arg5[%c0_32, %c0_33, %c0_34, %c0_35] : memref<2x4x8x8xf32, #tpu.memory_space<vmem>>, vector<2x4x8x8xf32>
      tpu.vector_store %arg5[%c0_32, %c0_33, %c0_34, %c0_35], %45 {strides = array<i32>} : memref<2x4x8x8xf32, #tpu.memory_space<vmem>>, vector<2x4x8x8xf32>,
    } else {
    }
    return
  }
  func.func @transform_0(%arg0: i32, %arg1: i32) -> (i32, i32, i32, i32) {
    %c0_i32 = arith.constant 0 : i32
    %c0_i32_0 = arith.constant 0 : i32
    %c0_i32_1 = arith.constant 0 : i32
    %c0_i32_2 = arith.constant 0 : i32
    return %c0_i32, %c0_i32_0, %arg0, %c0_i32_1 : i32, i32, i32, i32
  }
  func.func @transform_1(%arg0: i32, %arg1: i32) -> (i32, i32, i32, i32) {
    %c0_i32 = arith.constant 0 : i32
    %c0_i32_0 = arith.constant 0 : i32
    %c0_i32_1 = arith.constant 0 : i32
    %c0_i32_2 = arith.constant 0 : i32
    return %c0_i32, %c0_i32_0, %arg1, %c0_i32_1 : i32, i32, i32, i32
  }
  func.func @transform_2(%arg0: i32, %arg1: i32) -> (i32, i32, i32, i32) {
    %c0_i32 = arith.constant 0 : i32
    %c0_i32_0 = arith.constant 0 : i32
    %c0_i32_1 = arith.constant 0 : i32
    %c0_i32_2 = arith.constant 0 : i32
    return %c0_i32, %c0_i32_0, %arg1, %c0_i32_1 : i32, i32, i32, i32
  }
  func.func @transform_3(%arg0: i32, %arg1: i32) -> (i32, i32, i32, i32) {
    %c0_i32 = arith.constant 0 : i32
    %c0_i32_0 = arith.constant 0 : i32
    %c0_i32_1 = arith.constant 0 : i32
    %c0_i32_2 = arith.constant 0 : i32
    return %c0_i32, %c0_i32_0, %arg0, %c0_i32_1 : i32, i32, i32, i32
  }
}

module attributes {stable_mosaic.version = 11 : i64} {
  func.func @_matmul_res_kernel(%arg0: i32, %arg1: i32, %arg2: i32, %arg3: memref<16x128xf32, #tpu.memory_space<vmem>>, %arg4: memref<128x32xf32, #tpu.memory_space<vmem>>, %arg5: memref<1x32xf32, #tpu.memory_space<vmem>>, %arg6: memref<16x32xf32, #tpu.memory_space<vmem>>, %arg7: memref<16x32xf32, #tpu.memory_space<vmem>>, %arg8: memref<16x32xf32, #tpu.memory_space<vmem>>) attributes {dimension_semantics = [#tpu.dimension_semantics<parallel>, #tpu.dimension_semantics<parallel>, #tpu.dimension_semantics<arbitrary>], iteration_bounds = array<i64: 1, 1, 1>, scalar_prefetch = 0 : i64, scratch_operands = 1 : i64, tpu.core_type = #tpu.core_type<tc>, window_params = [{transform_indices = @transform_0, window_bounds = array<i64: 16, 128>}, {transform_indices = @transform_1, window_bounds = array<i64: 128, 32>}, {transform_indices = @transform_2, window_bounds = array<i64: 1, 32>}, {transform_indices = @transform_3, window_bounds = array<i64: 16, 32>}, {transform_indices = @transform_4, window_bounds = array<i64: 16, 32>}]} {
    %c0_i32 = arith.constant 0 : i32
    %0 = arith.cmpi eq, %arg2, %c0_i32 : i32
    %1 = arith.extui %0 : i1 to i32
    %c0_i32_0 = arith.constant 0 : i32
    %2 = arith.cmpi ne, %1, %c0_i32_0 : i32
    scf.if %2 {
      %cst_10 = arith.constant 0.000000e+00 : f32
      %12 = vector.broadcast %cst_10 : f32 to vector<16x32xf32>
      %c0_11 = arith.constant 0 : index
      %c0_12 = arith.constant 0 : index
      %13 = vector.load %arg8[%c0_11, %c0_12] : memref<16x32xf32, #tpu.memory_space<vmem>>, vector<16x32xf32>
      tpu.vector_store %arg8[%c0_11, %c0_12], %12 {strides = array<i32>} : memref<16x32xf32, #tpu.memory_space<vmem>>, vector<16x32xf32>,
    } else {
    }
    %c0 = arith.constant 0 : index
    %c0_1 = arith.constant 0 : index
    %3 = vector.load %arg8[%c0, %c0_1] : memref<16x32xf32, #tpu.memory_space<vmem>>, vector<16x32xf32>
    %c0_2 = arith.constant 0 : index
    %c0_3 = arith.constant 0 : index
    %4 = vector.load %arg3[%c0_2, %c0_3] : memref<16x128xf32, #tpu.memory_space<vmem>>, vector<16x128xf32>
    %c0_4 = arith.constant 0 : index
    %c0_5 = arith.constant 0 : index
    %5 = vector.load %arg4[%c0_4, %c0_5] : memref<128x32xf32, #tpu.memory_space<vmem>>, vector<128x32xf32>
    %cst = arith.constant dense<0.000000e+00> : vector<16x32xf32>
    %6 = tpu.matmul %4, %5, %cst {dimension_numbers = #tpu.dot_dimension_numbers<[1], [0], [0], [1], [0, 0, 1, 1], [], []>} : vector<16x128xf32>, vector<128x32xf32>, vector<16x32xf32> -> vector<16x32xf32>
    %7 = arith.addf %3, %6 : vector<16x32xf32>
    %c0_6 = arith.constant 0 : index
    %c0_7 = arith.constant 0 : index
    %8 = vector.load %arg8[%c0_6, %c0_7] : memref<16x32xf32, #tpu.memory_space<vmem>>, vector<16x32xf32>
    tpu.vector_store %arg8[%c0_6, %c0_7], %7 {strides = array<i32>} : memref<16x32xf32, #tpu.memory_space<vmem>>, vector<16x32xf32>,
    %c0_i32_8 = arith.constant 0 : i32
    %9 = arith.cmpi eq, %arg2, %c0_i32_8 : i32
    %10 = arith.extui %9 : i1 to i32
    %c0_i32_9 = arith.constant 0 : i32
    %11 = arith.cmpi ne, %10, %c0_i32_9 : i32
    scf.if %11 {
      %c0_10 = arith.constant 0 : index
      %c0_11 = arith.constant 0 : index
      %12 = vector.load %arg8[%c0_10, %c0_11] : memref<16x32xf32, #tpu.memory_space<vmem>>, vector<16x32xf32>
      %c0_12 = arith.constant 0 : index
      %c0_13 = arith.constant 0 : index
      %13 = vector.load %arg5[%c0_12, %c0_13] : memref<1x32xf32, #tpu.memory_space<vmem>>, vector<1x32xf32>
      %14 = vector.broadcast %13 : vector<1x32xf32> to vector<16x32xf32>
      %15 = arith.addf %12, %14 : vector<16x32xf32>
      %c0_14 = arith.constant 0 : index
      %c0_15 = arith.constant 0 : index
      %16 = vector.load %arg6[%c0_14, %c0_15] : memref<16x32xf32, #tpu.memory_space<vmem>>, vector<16x32xf32>
      %17 = arith.addf %15, %16 : vector<16x32xf32>
      %c0_16 = arith.constant 0 : index
      %c0_17 = arith.constant 0 : index
      %18 = vector.load %arg7[%c0_16, %c0_17] : memref<16x32xf32, #tpu.memory_space<vmem>>, vector<16x32xf32>
      tpu.vector_store %arg7[%c0_16, %c0_17], %17 {strides = array<i32>} : memref<16x32xf32, #tpu.memory_space<vmem>>, vector<16x32xf32>,
    } else {
    }
    return
  }
  func.func @transform_0(%arg0: i32, %arg1: i32, %arg2: i32) -> (i32, i32) {
    %c0_i32 = arith.constant 0 : i32
    return %arg0, %arg2 : i32, i32
  }
  func.func @transform_1(%arg0: i32, %arg1: i32, %arg2: i32) -> (i32, i32) {
    %c0_i32 = arith.constant 0 : i32
    return %arg2, %arg1 : i32, i32
  }
  func.func @transform_2(%arg0: i32, %arg1: i32, %arg2: i32) -> (i32, i32) {
    %c0_i32 = arith.constant 0 : i32
    %c0_i32_0 = arith.constant 0 : i32
    return %c0_i32, %arg1 : i32, i32
  }
  func.func @transform_3(%arg0: i32, %arg1: i32, %arg2: i32) -> (i32, i32) {
    %c0_i32 = arith.constant 0 : i32
    return %arg0, %arg1 : i32, i32
  }
  func.func @transform_4(%arg0: i32, %arg1: i32, %arg2: i32) -> (i32, i32) {
    %c0_i32 = arith.constant 0 : i32
    return %arg0, %arg1 : i32, i32
  }
}

module attributes {stable_mosaic.version = 11 : i64} {
  func.func @_ln_matmul_kernel(%arg0: i32, %arg1: i32, %arg2: memref<16x32xf32, #tpu.memory_space<vmem>>, %arg3: memref<1x32xf32, #tpu.memory_space<vmem>>, %arg4: memref<1x32xf32, #tpu.memory_space<vmem>>, %arg5: memref<32x96xf32, #tpu.memory_space<vmem>>, %arg6: memref<1x96xf32, #tpu.memory_space<vmem>>, %arg7: memref<16x96xf32, #tpu.memory_space<vmem>>) attributes {dimension_semantics = [#tpu.dimension_semantics<parallel>, #tpu.dimension_semantics<parallel>], iteration_bounds = array<i64: 1, 1>, scalar_prefetch = 0 : i64, scratch_operands = 0 : i64, tpu.core_type = #tpu.core_type<tc>, window_params = [{transform_indices = @transform_0, window_bounds = array<i64: 16, 32>}, {pipeline_mode = #tpu.pipeline_mode<synchronous>, transform_indices = @transform_1, window_bounds = array<i64: 1, 32>}, {pipeline_mode = #tpu.pipeline_mode<synchronous>, transform_indices = @transform_2, window_bounds = array<i64: 1, 32>}, {transform_indices = @transform_3, window_bounds = array<i64: 32, 96>}, {transform_indices = @transform_4, window_bounds = array<i64: 1, 96>}, {transform_indices = @transform_5, window_bounds = array<i64: 16, 96>}]} {
    %c0 = arith.constant 0 : index
    %c0_0 = arith.constant 0 : index
    %0 = vector.load %arg2[%c0, %c0_0] : memref<16x32xf32, #tpu.memory_space<vmem>>, vector<16x32xf32>
    %cst = arith.constant dense<0.000000e+00> : vector<16xf32>
    %1 = vector.multi_reduction <add>, %0, %cst [1] : vector<16x32xf32> to vector<16xf32>
    %2 = vector.shape_cast %1 : vector<16xf32> to vector<16x1xf32>
    %cst_1 = arith.constant 3.200000e+01 : f32
    %3 = vector.broadcast %cst_1 : f32 to vector<16x1xf32>
    %4 = arith.divf %2, %3 : vector<16x1xf32>
    %5 = vector.broadcast %4 : vector<16x1xf32> to vector<16x32xf32>
    %6 = arith.subf %0, %5 : vector<16x32xf32>
    %7 = arith.mulf %6, %6 : vector<16x32xf32>
    %cst_2 = arith.constant dense<0.000000e+00> : vector<16xf32>
    %8 = vector.multi_reduction <add>, %7, %cst_2 [1] : vector<16x32xf32> to vector<16xf32>
    %9 = vector.shape_cast %8 : vector<16xf32> to vector<16x1xf32>
    %cst_3 = arith.constant 3.200000e+01 : f32
    %10 = vector.broadcast %cst_3 : f32 to vector<16x1xf32>
    %11 = arith.divf %9, %10 : vector<16x1xf32>
    %12 = vector.broadcast %4 : vector<16x1xf32> to vector<16x32xf32>
    %13 = arith.subf %0, %12 : vector<16x32xf32>
    %cst_4 = arith.constant 9.99999974E-6 : f32
    %14 = vector.broadcast %cst_4 : f32 to vector<16x1xf32>
    %15 = arith.addf %11, %14 : vector<16x1xf32>
    %16 = math.rsqrt %15 : vector<16x1xf32>
    %17 = vector.broadcast %16 : vector<16x1xf32> to vector<16x32xf32>
    %18 = arith.mulf %13, %17 : vector<16x32xf32>
    %c0_5 = arith.constant 0 : index
    %c0_6 = arith.constant 0 : index
    %19 = vector.load %arg3[%c0_5, %c0_6] : memref<1x32xf32, #tpu.memory_space<vmem>>, vector<1x32xf32>
    %20 = vector.broadcast %19 : vector<1x32xf32> to vector<16x32xf32>
    %21 = arith.mulf %18, %20 : vector<16x32xf32>
    %c0_7 = arith.constant 0 : index
    %c0_8 = arith.constant 0 : index
    %22 = vector.load %arg4[%c0_7, %c0_8] : memref<1x32xf32, #tpu.memory_space<vmem>>, vector<1x32xf32>
    %23 = vector.broadcast %22 : vector<1x32xf32> to vector<16x32xf32>
    %24 = arith.addf %21, %23 : vector<16x32xf32>
    %c0_9 = arith.constant 0 : index
    %c0_10 = arith.constant 0 : index
    %25 = vector.load %arg5[%c0_9, %c0_10] : memref<32x96xf32, #tpu.memory_space<vmem>>, vector<32x96xf32>
    %cst_11 = arith.constant dense<0.000000e+00> : vector<16x96xf32>
    %26 = tpu.matmul %24, %25, %cst_11 {dimension_numbers = #tpu.dot_dimension_numbers<[1], [0], [0], [1], [0, 0, 1, 1], [], []>} : vector<16x32xf32>, vector<32x96xf32>, vector<16x96xf32> -> vector<16x96xf32>
    %c0_12 = arith.constant 0 : index
    %c0_13 = arith.constant 0 : index
    %27 = vector.load %arg6[%c0_12, %c0_13] : memref<1x96xf32, #tpu.memory_space<vmem>>, vector<1x96xf32>
    %28 = vector.broadcast %27 : vector<1x96xf32> to vector<16x96xf32>
    %29 = arith.addf %26, %28 : vector<16x96xf32>
    %c0_14 = arith.constant 0 : index
    %c0_15 = arith.constant 0 : index
    %30 = vector.load %arg7[%c0_14, %c0_15] : memref<16x96xf32, #tpu.memory_space<vmem>>, vector<16x96xf32>
    tpu.vector_store %arg7[%c0_14, %c0_15], %29 {strides = array<i32>} : memref<16x96xf32, #tpu.memory_space<vmem>>, vector<16x96xf32>,
    return
  }
  func.func @transform_0(%arg0: i32, %arg1: i32) -> (i32, i32) {
    %c0_i32 = arith.constant 0 : i32
    %c0_i32_0 = arith.constant 0 : i32
    return %arg0, %c0_i32 : i32, i32
  }
  func.func @transform_1(%arg0: i32, %arg1: i32) -> (i32, i32) {
    %c0_i32 = arith.constant 0 : i32
    %c0_i32_0 = arith.constant 0 : i32
    %c0_i32_1 = arith.constant 0 : i32
    return %c0_i32, %c0_i32_0 : i32, i32
  }
  func.func @transform_2(%arg0: i32, %arg1: i32) -> (i32, i32) {
    %c0_i32 = arith.constant 0 : i32
    %c0_i32_0 = arith.constant 0 : i32
    %c0_i32_1 = arith.constant 0 : i32
    return %c0_i32, %c0_i32_0 : i32, i32
  }
  func.func @transform_3(%arg0: i32, %arg1: i32) -> (i32, i32) {
    %c0_i32 = arith.constant 0 : i32
    %c0_i32_0 = arith.constant 0 : i32
    return %c0_i32, %arg1 : i32, i32
  }
  func.func @transform_4(%arg0: i32, %arg1: i32) -> (i32, i32) {
    %c0_i32 = arith.constant 0 : i32
    %c0_i32_0 = arith.constant 0 : i32
    return %c0_i32, %arg1 : i32, i32
  }
  func.func @transform_5(%arg0: i32, %arg1: i32) -> (i32, i32) {
    %c0_i32 = arith.constant 0 : i32
    return %arg0, %arg1 : i32, i32
  }
}

module attributes {stable_mosaic.version = 11 : i64} {
  func.func @_layernorm_kernel(%arg0: i32, %arg1: memref<16x32xf32, #tpu.memory_space<vmem>>, %arg2: memref<1x32xf32, #tpu.memory_space<vmem>>, %arg3: memref<1x32xf32, #tpu.memory_space<vmem>>, %arg4: memref<16x32xf32, #tpu.memory_space<vmem>>) attributes {dimension_semantics = [#tpu.dimension_semantics<parallel>], iteration_bounds = array<i64: 1>, scalar_prefetch = 0 : i64, scratch_operands = 0 : i64, tpu.core_type = #tpu.core_type<tc>, window_params = [{transform_indices = @transform_0, window_bounds = array<i64: 16, 32>}, {pipeline_mode = #tpu.pipeline_mode<synchronous>, transform_indices = @transform_1, window_bounds = array<i64: 1, 32>}, {pipeline_mode = #tpu.pipeline_mode<synchronous>, transform_indices = @transform_2, window_bounds = array<i64: 1, 32>}, {transform_indices = @transform_3, window_bounds = array<i64: 16, 32>}]} {
    %c0 = arith.constant 0 : index
    %c0_0 = arith.constant 0 : index
    %0 = vector.load %arg1[%c0, %c0_0] : memref<16x32xf32, #tpu.memory_space<vmem>>, vector<16x32xf32>
    %cst = arith.constant dense<0.000000e+00> : vector<16xf32>
    %1 = vector.multi_reduction <add>, %0, %cst [1] : vector<16x32xf32> to vector<16xf32>
    %2 = vector.shape_cast %1 : vector<16xf32> to vector<16x1xf32>
    %cst_1 = arith.constant 3.200000e+01 : f32
    %3 = vector.broadcast %cst_1 : f32 to vector<16x1xf32>
    %4 = arith.divf %2, %3 : vector<16x1xf32>
    %5 = vector.broadcast %4 : vector<16x1xf32> to vector<16x32xf32>
    %6 = arith.subf %0, %5 : vector<16x32xf32>
    %7 = arith.mulf %6, %6 : vector<16x32xf32>
    %cst_2 = arith.constant dense<0.000000e+00> : vector<16xf32>
    %8 = vector.multi_reduction <add>, %7, %cst_2 [1] : vector<16x32xf32> to vector<16xf32>
    %9 = vector.shape_cast %8 : vector<16xf32> to vector<16x1xf32>
    %cst_3 = arith.constant 3.200000e+01 : f32
    %10 = vector.broadcast %cst_3 : f32 to vector<16x1xf32>
    %11 = arith.divf %9, %10 : vector<16x1xf32>
    %12 = vector.broadcast %4 : vector<16x1xf32> to vector<16x32xf32>
    %13 = arith.subf %0, %12 : vector<16x32xf32>
    %cst_4 = arith.constant 9.99999974E-6 : f32
    %14 = vector.broadcast %cst_4 : f32 to vector<16x1xf32>
    %15 = arith.addf %11, %14 : vector<16x1xf32>
    %16 = math.rsqrt %15 : vector<16x1xf32>
    %17 = vector.broadcast %16 : vector<16x1xf32> to vector<16x32xf32>
    %18 = arith.mulf %13, %17 : vector<16x32xf32>
    %c0_5 = arith.constant 0 : index
    %c0_6 = arith.constant 0 : index
    %19 = vector.load %arg2[%c0_5, %c0_6] : memref<1x32xf32, #tpu.memory_space<vmem>>, vector<1x32xf32>
    %20 = vector.broadcast %19 : vector<1x32xf32> to vector<16x32xf32>
    %21 = arith.mulf %18, %20 : vector<16x32xf32>
    %c0_7 = arith.constant 0 : index
    %c0_8 = arith.constant 0 : index
    %22 = vector.load %arg3[%c0_7, %c0_8] : memref<1x32xf32, #tpu.memory_space<vmem>>, vector<1x32xf32>
    %23 = vector.broadcast %22 : vector<1x32xf32> to vector<16x32xf32>
    %24 = arith.addf %21, %23 : vector<16x32xf32>
    %c0_9 = arith.constant 0 : index
    %c0_10 = arith.constant 0 : index
    %25 = vector.load %arg4[%c0_9, %c0_10] : memref<16x32xf32, #tpu.memory_space<vmem>>, vector<16x32xf32>
    tpu.vector_store %arg4[%c0_9, %c0_10], %24 {strides = array<i32>} : memref<16x32xf32, #tpu.memory_space<vmem>>, vector<16x32xf32>,
    return
  }
  func.func @transform_0(%arg0: i32) -> (i32, i32) {
    %c0_i32 = arith.constant 0 : i32
    %c0_i32_0 = arith.constant 0 : i32
    return %arg0, %c0_i32 : i32, i32
  }
  func.func @transform_1(%arg0: i32) -> (i32, i32) {
    %c0_i32 = arith.constant 0 : i32
    %c0_i32_0 = arith.constant 0 : i32
    %c0_i32_1 = arith.constant 0 : i32
    return %c0_i32, %c0_i32_0 : i32, i32
  }
  func.func @transform_2(%arg0: i32) -> (i32, i32) {
    %c0_i32 = arith.constant 0 : i32
    %c0_i32_0 = arith.constant 0 : i32
    %c0_i32_1 = arith.constant 0 : i32
    return %c0_i32, %c0_i32_0 : i32, i32
  }
  func.func @transform_3(%arg0: i32) -> (i32, i32) {
    %c0_i32 = arith.constant 0 : i32
    %c0_i32_0 = arith.constant 0 : i32
    return %arg0, %c0_i32 : i32, i32
  }
}

</mosaic_0001>

<llo_original>
// kernel: transformer_forward.11
$region0: #{transformer_forward.11}
  #allocation0 [shape = 'u32[]', space=smem, size = 0x4, offset = 0x4, fixed_abs, tag = 'smem constant byte address 0x4 - core index']
  #allocation1 [shape = 'u32[72,128]{1,0:T(1,128)}', space=vmem, size = 0x9000, scoped, tag = 'internal scratch']
  %s0 = inlined_call_operand.vmem [shape: f32[16,32], index: 0, kind: input, shape index: {}]
  %s1 = inlined_call_operand.vmem [shape: f32[1,32], index: 1, kind: input, shape index: {}]
  %s2 = inlined_call_operand.vmem [shape: f32[1,32], index: 2, kind: input, shape index: {}]
  %s3 = inlined_call_operand.hbm [shape: f32[32,96], index: 3, kind: input, shape index: {}]
  %s4 = inlined_call_operand.vmem [shape: f32[1,96], index: 4, kind: input, shape index: {}]
  %s5 = inlined_call_operand.vmem [shape: f32[16,96], index: 5, kind: output, shape index: {}]
  %s6 = sld [smem:[#allocation0]]
  $region34: #{transformer_forward.11} parent=0
    _
  %s8 = ssub.s32 1, %s6
  %s9 = scalar_select 0, %s8, %s6
  $region1: #{transformer_forward.11} parent=0
    #allocation2 [shape = 'u8[16384]{0}', space=vmem, size = 0x4000, scoped, tag = 'input window, operand 3, single buffered']
    #allocation3 [shape = 's32[1]{0}', space=sflag, size = 0x4, scoped, tag = 'scoped memory for transformer_forward.11']
    %10 = vsyncpa [#allocation3], 0
    // Predicated region
    $region2: #{transformer_forward.11} parent=1 // pred_check
      _
    $region3: #{transformer_forward.11} parent=1 // pred_check_branch
      %12 = sbr.rel (0) target = $region5
    $region4: #{transformer_forward.11} parent=1 // pred_region
      _
    $region5: #{transformer_forward.11} parent=1 // pred_fallthru
      _
    // Predicated region
    $region6: #{transformer_forward.11} parent=1 // pred_check
      _
    $region7: #{transformer_forward.11} parent=1 // pred_check_branch
      %14 = sbr.rel (0) target = $region9
    $region8: #{transformer_forward.11} parent=1 // pred_region
      _
    $region9: #{transformer_forward.11} parent=1 // pred_fallthru
      _
    // Predicated region
    $region10: #{transformer_forward.11} parent=1 // pred_check
      _
    $region11: #{transformer_forward.11} parent=1 // pred_check_branch
      %16 = sbr.rel (0) target = $region13
    $region12: #{transformer_forward.11} parent=1 // pred_region
      _
    $region13: #{transformer_forward.11} parent=1 // pred_fallthru
      _
    // Predicated region
    $region14: #{transformer_forward.11} parent=1 // pred_check
      _
    $region15: #{transformer_forward.11} parent=1 // pred_check_branch
      %18 = sbr.rel (0) target = $region17
    $region16: #{transformer_forward.11} parent=1 // pred_region
      %20 = vsyncadd [#allocation3], 0
      %s21 = sshll.u32 %s3, 4
      %s22 = int_to_ptr.hbm [resolvable:$true] %s21
      %s23 = sshll.u32 [#allocation2], 4
      %s24 = int_to_ptr.vmem [resolvable:$true] %s23
      %29 = dma.hbm_to_vmem [thread:$0]  %s22, 512, %s24, [#allocation3], 128, 128, 8
    $region17: #{transformer_forward.11} parent=1 // pred_fallthru
      _
    // Predicated region
    $region18: #{transformer_forward.11} parent=1 // pred_check
      _
    $region19: #{transformer_forward.11} parent=1 // pred_check_branch
      %31 = sbr.rel (0) target = $region21
    $region20: #{transformer_forward.11} parent=1 // pred_region
      _
    $region21: #{transformer_forward.11} parent=1 // pred_fallthru
      _
    // Predicated region
    $region22: #{transformer_forward.11} parent=1 // pred_check
      _
    $region23: #{transformer_forward.11} parent=1 // pred_check_branch
      %33 = sbr.rel (0) target = $region25
    $region24: #{transformer_forward.11} parent=1 // pred_region
      %35 = dma.done [#allocation3], 512
    $region25: #{transformer_forward.11} parent=1 // pred_fallthru
      _
    %v36 = vld [vmem:[%s0] sm:$0xff]
    %v37 = vld [vmem:[%s0 + $0x8] sm:$0xff]
    %vm38 = vcmask 261120
    %v39 = vsel %vm38, %v36, 0.0
    %40 = vadd.xlane.f32.xlu0 %v39
    %v41 = vpop.xlane.xlu0 %40
    %v42 = vsel %vm38, %v37, 0.0
    %43 = vadd.xlane.f32.xlu0 %v42
    %v44 = vpop.xlane.xlu0 %43
    %v45 = vrcp.pop 32.0
    %v46 = vmul.f32 32.0, %v45
    %v47 = vsub.f32 1.0, %v46
    %v48 = vmul.f32 %v45, %v47
    %v49 = vadd.f32 %v45, %v48
    %vm50 = vweird.f32 %v45
    %v51 = vsel %vm50, %v45, %v49
    %v52 = vmul.f32 %v41, %v51
    %v53 = vmul.f32 %v44, %v51
    %v54 = vsub.f32 %v36, %v52
    %v55 = vsub.f32 %v37, %v53
    %v56 = vmul.f32 %v54, %v54
    %v57 = vmul.f32 %v55, %v55
    %v58 = vsel %vm38, %v56, 0.0
    %59 = vadd.xlane.f32.xlu0 %v58
    %v60 = vpop.xlane.xlu0 %59
    %v61 = vsel %vm38, %v57, 0.0
    %62 = vadd.xlane.f32.xlu0 %v61
    %v63 = vpop.xlane.xlu0 %62
    %v64 = vmul.f32 %v60, %v51
    %v65 = vmul.f32 %v63, %v51
    %v66 = vadd.f32 %v64, 1e-05
    %v67 = vadd.f32 %v65, 1e-05
    %v68 = vrsqrt.pop %v66
    %v69 = vmul.f32 %v68, %v66
    %v70 = vmul.f32 %v69, %v68
    %v71 = vmul.f32 0.5, %v70
    %v72 = vsub.f32 1.5, %v71
    %v73 = vmul.f32 %v68, %v72
    %vm74 = vweird.f32 %v66
    %vm75 = vweird.f32 %v68
    %vm76 = vmor %vm74, %vm75
    %v77 = vsel %vm76, %v68, %v73
    %v78 = vrsqrt.pop %v67
    %v79 = vmul.f32 %v78, %v67
    %v80 = vmul.f32 %v79, %v78
    %v81 = vmul.f32 0.5, %v80
    %v82 = vsub.f32 1.5, %v81
    %v83 = vmul.f32 %v78, %v82
    %vm84 = vweird.f32 %v67
    %vm85 = vweird.f32 %v78
    %vm86 = vmor %vm84, %vm85
    %v87 = vsel %vm86, %v78, %v83
    %v88 = vmul.f32 %v54, %v77
    %v89 = vmul.f32 %v55, %v87
    %v90 = vld [vmem:[%s1] sm:$0x1]
    %v92 = vperm.slane %v90, 0
    %v94 = vmul.f32 %v88, %v92
    %v95 = vmul.f32 %v89, %v92
    %v96 = vld [vmem:[%s2] sm:$0x1]
    %v98 = vperm.slane %v96, 0
    %v100 = vadd.f32 %v94, %v98
    %v101 = vadd.f32 %v95, %v98
    %v102 = vld [vmem:[#allocation2] sm:$0xff]
    %v103 = vld [vmem:[#allocation2 + $0x8] sm:$0xff]
    %v104 = vld [vmem:[#allocation2 + $0x10] sm:$0xff]
    %v105 = vld [vmem:[#allocation2 + $0x18] sm:$0xff]
    %v106 = vld [vmem:[%s4] sm:$0x1]
    %v108 = vperm.slane %v106, 0
    %v111 = vsel %vm38, %v100, 0
    %v114 = vsel %vm38, %v101, 0
    %116 = vmatpush.msra.mxu0 0.0
    %117 = vmatpush.msra.mxu0 0.0
    %118 = vmatpush.msra.mxu0 0.0
    %119 = vmatpush.msra.mxu0 0.0
    %120 = vmatpush.msra.mxu0 0.0
    %121 = vmatpush.msra.mxu0 0.0
    %122 = vmatpush.msra.mxu0 0.0
    %123 = vmatpush.msra.mxu0 0.0
    %124 = vmatpush.msra.mxu0 0.0
    %125 = vmatpush.msra.mxu0 0.0
    %126 = vmatpush.msra.mxu0 0.0
    %127 = vmatpush.msra.mxu0 0.0
    %128 = vmatpush.msra.mxu0 %v105
    %129 = vmatpush.msra.mxu0 %v104
    %130 = vmatpush.msra.mxu0 %v103
    %131 = vmatpush.msra.mxu0 %v102
    %132 = vmatmul.f32.gmra.mxu0 %v111
    %v133 = vpop.f32.mrf.mxu0
    %v134 = vadd.f32 %v108, %v133
    %135 = vmatmul.f32.gmra.mxu0 %v114
    %v136 = vpop.f32.mrf.mxu0
    %v137 = vadd.f32 %v108, %v136
    %138 = vdwg.mxu0
    %vm139 = vcmask 785408
    %140 = vst.msk [vmem:[%s5] sm:$0xff] %vm139, %v134
    %141 = vst.msk [vmem:[%s5 + $0x8] sm:$0xff] %vm139, %v137
    // Predicated region
    $region26: #{transformer_forward.11} parent=1 // pred_check
      _
    $region27: #{transformer_forward.11} parent=1 // pred_check_branch
      %143 = sbr.rel (0) target = $region29
    $region28: #{transformer_forward.11} parent=1 // pred_region
      _
    $region29: #{transformer_forward.11} parent=1 // pred_fallthru
      _
    // Predicated region
    $region30: #{transformer_forward.11} parent=1 // pred_check
      _
    $region31: #{transformer_forward.11} parent=1 // pred_check_branch
      %145 = sbr.rel (0) target = $region33
    $region32: #{transformer_forward.11} parent=1 // pred_region
      _
    $region33: #{transformer_forward.11} parent=1 // pred_fallthru
      _
    %146 = vsyncpa [#allocation3], 1

// kernel: transformer_forward.14
$region0: #{transformer_forward.14}
  #allocation0 [shape = 'u32[]', space=smem, size = 0x4, offset = 0x4, fixed_abs, tag = 'smem constant byte address 0x4 - core index']
  #allocation1 [shape = 'u32[72,128]{1,0:T(1,128)}', space=vmem, size = 0x9000, scoped, tag = 'internal scratch']
  %s0 = inlined_call_operand.vmem [shape: f32[16,32], index: 0, kind: input, shape index: {}]
  %s1 = inlined_call_operand.vmem [shape: f32[1,32], index: 1, kind: input, shape index: {}]
  %s2 = inlined_call_operand.vmem [shape: f32[1,32], index: 2, kind: input, shape index: {}]
  %s3 = inlined_call_operand.vmem [shape: f32[32,128], index: 3, kind: input, shape index: {}]
  %s4 = inlined_call_operand.vmem [shape: f32[1,128], index: 4, kind: input, shape index: {}]
  %s5 = inlined_call_operand.vmem [shape: f32[16,128], index: 5, kind: output, shape index: {}]
  %s6 = sld [smem:[#allocation0]]
  $region30: #{transformer_forward.14} parent=0
    _
  %s8 = ssub.s32 1, %s6
  %s9 = scalar_select 0, %s8, %s6
  // Predicated region
  $region2: #{transformer_forward.14} parent=0 // pred_check
    _
  $region3: #{transformer_forward.14} parent=0 // pred_check_branch
    %11 = sbr.rel (0) target = $region5
  $region4: #{transformer_forward.14} parent=0 // pred_region
    _
  $region5: #{transformer_forward.14} parent=0 // pred_fallthru
    _
  // Predicated region
  $region6: #{transformer_forward.14} parent=0 // pred_check
    _
  $region7: #{transformer_forward.14} parent=0 // pred_check_branch
    %13 = sbr.rel (0) target = $region9
  $region8: #{transformer_forward.14} parent=0 // pred_region
    _
  $region9: #{transformer_forward.14} parent=0 // pred_fallthru
    _
  // Predicated region
  $region10: #{transformer_forward.14} parent=0 // pred_check
    _
  $region11: #{transformer_forward.14} parent=0 // pred_check_branch
    %15 = sbr.rel (0) target = $region13
  $region12: #{transformer_forward.14} parent=0 // pred_region
    _
  $region13: #{transformer_forward.14} parent=0 // pred_fallthru
    _
  // Predicated region
  $region14: #{transformer_forward.14} parent=0 // pred_check
    _
  $region15: #{transformer_forward.14} parent=0 // pred_check_branch
    %17 = sbr.rel (0) target = $region17
  $region16: #{transformer_forward.14} parent=0 // pred_region
    _
  $region17: #{transformer_forward.14} parent=0 // pred_fallthru
    _
  // Predicated region
  $region18: #{transformer_forward.14} parent=0 // pred_check
    _
  $region19: #{transformer_forward.14} parent=0 // pred_check_branch
    %19 = sbr.rel (0) target = $region21
  $region20: #{transformer_forward.14} parent=0 // pred_region
    _
  $region21: #{transformer_forward.14} parent=0 // pred_fallthru
    _
  %v20 = vld [vmem:[%s0] sm:$0xff]
  %v21 = vld [vmem:[%s0 + $0x8] sm:$0xff]
  %vm22 = vcmask 261120
  %v23 = vsel %vm22, %v20, 0.0
  %24 = vadd.xlane.f32.xlu0 %v23
  %v25 = vpop.xlane.xlu0 %24
  %v26 = vsel %vm22, %v21, 0.0
  %27 = vadd.xlane.f32.xlu0 %v26
  %v28 = vpop.xlane.xlu0 %27
  %v29 = vrcp.pop 32.0
  %v30 = vmul.f32 32.0, %v29
  %v31 = vsub.f32 1.0, %v30
  %v32 = vmul.f32 %v29, %v31
  %v33 = vadd.f32 %v29, %v32
  %vm34 = vweird.f32 %v29
  %v35 = vsel %vm34, %v29, %v33
  %v36 = vmul.f32 %v25, %v35
  %v37 = vmul.f32 %v28, %v35
  %v38 = vsub.f32 %v20, %v36
  %v39 = vsub.f32 %v21, %v37
  %v40 = vmul.f32 %v38, %v38
  %v41 = vmul.f32 %v39, %v39
  %v42 = vsel %vm22, %v40, 0.0
  %43 = vadd.xlane.f32.xlu0 %v42
  %v44 = vpop.xlane.xlu0 %43
  %v45 = vsel %vm22, %v41, 0.0
  %46 = vadd.xlane.f32.xlu0 %v45
  %v47 = vpop.xlane.xlu0 %46
  %v48 = vmul.f32 %v44, %v35
  %v49 = vmul.f32 %v47, %v35
  %v50 = vadd.f32 %v48, 1e-05
  %v51 = vadd.f32 %v49, 1e-05
  %v52 = vrsqrt.pop %v50
  %v53 = vmul.f32 %v52, %v50
  %v54 = vmul.f32 %v53, %v52
  %v55 = vmul.f32 0.5, %v54
  %v56 = vsub.f32 1.5, %v55
  %v57 = vmul.f32 %v52, %v56
  %vm58 = vweird.f32 %v50
  %vm59 = vweird.f32 %v52
  %vm60 = vmor %vm58, %vm59
  %v61 = vsel %vm60, %v52, %v57
  %v62 = vrsqrt.pop %v51
  %v63 = vmul.f32 %v62, %v51
  %v64 = vmul.f32 %v63, %v62
  %v65 = vmul.f32 0.5, %v64
  %v66 = vsub.f32 1.5, %v65
  %v67 = vmul.f32 %v62, %v66
  %vm68 = vweird.f32 %v51
  %vm69 = vweird.f32 %v62
  %vm70 = vmor %vm68, %vm69
  %v71 = vsel %vm70, %v62, %v67
  %v72 = vmul.f32 %v38, %v61
  %v73 = vmul.f32 %v39, %v71
  %v74 = vld [vmem:[%s1] sm:$0x1]
  %v76 = vperm.slane %v74, 0
  %v78 = vmul.f32 %v72, %v76
  %v79 = vmul.f32 %v73, %v76
  %v80 = vld [vmem:[%s2] sm:$0x1]
  %v82 = vperm.slane %v80, 0
  %v84 = vadd.f32 %v78, %v82
  %v85 = vadd.f32 %v79, %v82
  %v86 = vld [vmem:[%s3] sm:$0xff]
  %v87 = vld [vmem:[%s3 + $0x8] sm:$0xff]
  %v88 = vld [vmem:[%s3 + $0x10] sm:$0xff]
  %v89 = vld [vmem:[%s3 + $0x18] sm:$0xff]
  %v90 = vld [vmem:[%s4] sm:$0x1]
  %v92 = vperm.slane %v90, 0
  %v95 = vsel %vm22, %v84, 0
  %v98 = vsel %vm22, %v85, 0
  %100 = vmatpush.msra.mxu0 0.0
  %101 = vmatpush.msra.mxu0 0.0
  %102 = vmatpush.msra.mxu0 0.0
  %103 = vmatpush.msra.mxu0 0.0
  %104 = vmatpush.msra.mxu0 0.0
  %105 = vmatpush.msra.mxu0 0.0
  %106 = vmatpush.msra.mxu0 0.0
  %107 = vmatpush.msra.mxu0 0.0
  %108 = vmatpush.msra.mxu0 0.0
  %109 = vmatpush.msra.mxu0 0.0
  %110 = vmatpush.msra.mxu0 0.0
  %111 = vmatpush.msra.mxu0 0.0
  %112 = vmatpush.msra.mxu0 %v89
  %113 = vmatpush.msra.mxu0 %v88
  %114 = vmatpush.msra.mxu0 %v87
  %115 = vmatpush.msra.mxu0 %v86
  %116 = vmatmul.f32.gmra.mxu0 %v95
  %v117 = vpop.f32.mrf.mxu0
  %v118 = vadd.f32 %v92, %v117
  %119 = vmatmul.f32.gmra.mxu0 %v98
  %v120 = vpop.f32.mrf.mxu0
  %v121 = vadd.f32 %v92, %v120
  %122 = vdwg.mxu0
  %v123 = vmul.f32 %v118, 0.5
  %v124 = vmul.f32 %v121, 0.5
  %v125 = vmul.f32 %v118, 0.70710677
  %v126 = vmul.f32 %v121, 0.70710677
  %v127 = vmul.f32 %v125, %v125
  %v128 = vmin.f32 16.0, %v127
  %v129 = vmul.f32 %v128, 2.1237322e-06
  %v130 = vadd.f32 %v129, 0.00028619796
  %v131 = vmul.f32 %v128, %v130
  %v132 = vadd.f32 %v131, 0.0036580483
  %v133 = vmul.f32 %v128, %v132
  %v134 = vadd.f32 %v133, 0.05243302
  %v135 = vmul.f32 %v128, %v134
  %v136 = vadd.f32 %v135, 0.18741608
  %v137 = vmul.f32 %v128, %v136
  %v138 = vadd.f32 %v137, 1.1283791
  %v139 = vmul.f32 %v125, %v138
  %v140 = vmul.f32 %v128, 3.8918573e-05
  %v141 = vadd.f32 %v140, 0.001143296
  %v142 = vmul.f32 %v128, %v141
  %v143 = vadd.f32 %v142, 0.014752088
  %v144 = vmul.f32 %v128, %v143
  %v145 = vadd.f32 %v144, 0.112945676
  %v146 = vmul.f32 %v128, %v145
  %v147 = vadd.f32 %v146, 0.4994258
  %v148 = vmul.f32 %v128, %v147
  %v149 = vadd.f32 %v148, 1.0
  %v150 = vrcp.pop %v149
  %v151 = vmul.f32 %v149, %v150
  %v152 = vsub.f32 1.0, %v151
  %v153 = vmul.f32 %v150, %v152
  %v154 = vadd.f32 %v150, %v153
  %vm155 = vweird.f32 %v149
  %vm156 = vweird.f32 %v150
  %vm157 = vmor %vm155, %vm156
  %v158 = vsel %vm157, %v150, %v154
  %v159 = vand.u32 2147483647, %v149
  %vm160 = vcmp.eq.f32.partialorder %v159, 8.507059e+37
  %v161 = vand.u32 %v149, 2147483648
  %v162 = vor.u32 1.1754944e-38, %v161
  %v163 = vsel %vm160, %v162, %v158
  %v164 = vmul.f32 %v139, %v163
  %v165 = vmin.f32 %v164, 1.0
  %v166 = vmax.f32 %v165, -1.0
  %v167 = vmul.f32 %v126, %v126
  %v168 = vmin.f32 16.0, %v167
  %v169 = vmul.f32 %v168, 2.1237322e-06
  %v170 = vadd.f32 %v169, 0.00028619796
  %v171 = vmul.f32 %v168, %v170
  %v172 = vadd.f32 %v171, 0.0036580483
  %v173 = vmul.f32 %v168, %v172
  %v174 = vadd.f32 %v173, 0.05243302
  %v175 = vmul.f32 %v168, %v174
  %v176 = vadd.f32 %v175, 0.18741608
  %v177 = vmul.f32 %v168, %v176
  %v178 = vadd.f32 %v177, 1.1283791
  %v179 = vmul.f32 %v126, %v178
  %v180 = vmul.f32 %v168, 3.8918573e-05
  %v181 = vadd.f32 %v180, 0.001143296
  %v182 = vmul.f32 %v168, %v181
  %v183 = vadd.f32 %v182, 0.014752088
  %v184 = vmul.f32 %v168, %v183
  %v185 = vadd.f32 %v184, 0.112945676
  %v186 = vmul.f32 %v168, %v185
  %v187 = vadd.f32 %v186, 0.4994258
  %v188 = vmul.f32 %v168, %v187
  %v189 = vadd.f32 %v188, 1.0
  %v190 = vrcp.pop %v189
  %v191 = vmul.f32 %v189, %v190
  %v192 = vsub.f32 1.0, %v191
  %v193 = vmul.f32 %v190, %v192
  %v194 = vadd.f32 %v190, %v193
  %vm195 = vweird.f32 %v189
  %vm196 = vweird.f32 %v190
  %vm197 = vmor %vm195, %vm196
  %v198 = vsel %vm197, %v190, %v194
  %v199 = vand.u32 2147483647, %v189
  %vm200 = vcmp.eq.f32.partialorder %v199, 8.507059e+37
  %v201 = vand.u32 %v189, 2147483648
  %v202 = vor.u32 1.1754944e-38, %v201
  %v203 = vsel %vm200, %v202, %v198
  %v204 = vmul.f32 %v179, %v203
  %v205 = vmin.f32 %v204, 1.0
  %v206 = vmax.f32 %v205, -1.0
  %v207 = vadd.f32 %v166, 1.0
  %v208 = vadd.f32 %v206, 1.0
  %v209 = vmul.f32 %v123, %v207
  %v210 = vmul.f32 %v124, %v208
  %211 = vst [vmem:[%s5] sm:$0xff] %v209
  %212 = vst [vmem:[%s5 + $0x8] sm:$0xff] %v210
  // Predicated region
  $region22: #{transformer_forward.14} parent=0 // pred_check
    _
  $region23: #{transformer_forward.14} parent=0 // pred_check_branch
    %214 = sbr.rel (0) target = $region25
  $region24: #{transformer_forward.14} parent=0 // pred_region
    _
  $region25: #{transformer_forward.14} parent=0 // pred_fallthru
    _
  // Predicated region
  $region26: #{transformer_forward.14} parent=0 // pred_check
    _
  $region27: #{transformer_forward.14} parent=0 // pred_check_branch
    %216 = sbr.rel (0) target = $region29
  $region28: #{transformer_forward.14} parent=0 // pred_region
    _
  $region29: #{transformer_forward.14} parent=0 // pred_fallthru
    _

// kernel: transformer_forward.13
$region0: #{transformer_forward.13}
  #allocation0 [shape = 'u32[]', space=smem, size = 0x4, offset = 0x4, fixed_abs, tag = 'smem constant byte address 0x4 - core index']
  #allocation1 [shape = 'u32[72,128]{1,0:T(1,128)}', space=vmem, size = 0x9000, scoped, tag = 'internal scratch']
  #allocation2 [shape = 'f32[2,8,32]{2,1,0:T(8,128)}', space=vmem, size = 0x2000, scoped, tag = 'scratch operand']
  %s0 = inlined_call_operand.vmem [shape: f32[2,4,8,8], index: 0, kind: input, shape index: {}]
  %s1 = inlined_call_operand.vmem [shape: f32[4,8,32], index: 1, kind: input, shape index: {}]
  %s2 = inlined_call_operand.vmem [shape: f32[1,32], index: 2, kind: input, shape index: {}]
  %s3 = inlined_call_operand.vmem [shape: f32[2,8,32], index: 3, kind: input, shape index: {}]
  %s4 = inlined_call_operand.vmem [shape: f32[2,8,32], index: 4, kind: output, shape index: {}]
  %s5 = sld [smem:[#allocation0]]
  $region95: #{transformer_forward.13} parent=0
    _
  %s7 = ssub.s32 1, %s5
  %s8 = scalar_select 0, %s7, %s5
  $region1: #{transformer_forward.13} parent=0
    #allocation3 [shape = 'u8[16384]{0}', space=vmem, size = 0x4000, scoped, tag = 'input window, operand 0']
    loop: start=0, step=1, limit=6
    $region2: #{transformer_forward.13} parent=1 // loop_pre_header
      _
    $region3: #{transformer_forward.13} parent=1 // loop_header
      %s10 = sphi 0, %s14
      %p11 = scmp.ge.s32.totalorder %s10, 6
      %s17 = sphi 0, %s29
      %s18 = sphi 0, %s25
      %s19 = sphi 0, %s17
      %s20 = sphi 0, %s18
      %s21 = sphi 0, %s19
      %s22 = sphi 0, %s20
      %s34 = sphi 0, %s36
      %s37 = sphi 0, %s34
      %s38 = sphi 0, %s37
      %s54 = sphi 0, %s38
      %s60 = sphi 0, %s62
      %s63 = sphi 0, %s60
      %s64 = sphi 0, %s63
      %s80 = sphi 0, %s64
      %s84 = sphi 0, %s84
      %s86 = sphi 0, %s84
      %s87 = sphi 0, %s86
      %s101 = sphi 0, %s87
      %s107 = sphi 0, %s109
      %s110 = sphi 0, %s107
      %s111 = sphi 0, %s110
      %s127 = sphi 0, %s111
      %s133 = sphi 0, %s135
      %s136 = sphi 0, %s133
      %s137 = sphi 0, %s136
      %s153 = sphi 0, %s137
    $region4: #{transformer_forward.13} parent=1 // loop_header_branch
      %13 = sbr.rel (%p11) target = $region8
    $region5: #{transformer_forward.13} parent=1 // loop_body
      %s15 = ssub.s32 %s10, 1
      %s16 = ssub.s32 %s10, 2
      %s23 = sadd.s32 1, %s18
      %p24 = scmp.ge.s32.totalorder %s23, 4
      %s25 = scalar_select %p24, 0, %s23
      %s26 = sadd.s32 1, %s17
      %s27 = scalar_select %p24, %s26, %s17
      %p28 = scmp.ge.s32.totalorder %s27, 1
      %s29 = scalar_select %p28, 0, %s27
      %s30 = ssub.s32 %s18, %s25
      %s31 = ssub.s32 %s17, %s29
      %s32 = sor.u32 %s30, %s31
      %p33 = scmp.eq.s32.totalorder %s32, 0
      %s35 = sadd.s32 %s34, 1
      %s36 = scalar_select %p33, %s34, %s35
      %p39 = pneg %p33
      %p40 = scmp.eq.s32.totalorder %s10, 3
      %p41 = por %p39, %p40
      %p42 = scmp.ne.s32.totalorder %s34, %s37
      %p43 = scmp.eq.s32.totalorder %s10, 0
      %p44 = por %p42, %p43
      %p45 = scmp.ne.s32.totalorder %s34, %s37
      %p46 = scmp.eq.s32.totalorder %s15, 3
      %p47 = por %p45, %p46
      %p48 = scmp.ne.s32.totalorder %s37, %s38
      %p49 = scmp.eq.s32.totalorder %s15, 0
      %p50 = por %p48, %p49
      %p51 = scmp.ne.s32.totalorder %s37, %s38
      %p52 = scmp.eq.s32.totalorder %s16, 3
      %p53 = por %p51, %p52
      %p55 = scmp.ne.s32.totalorder %s38, %s54
      %p56 = scmp.eq.s32.totalorder %s16, 0
      %p57 = por %p55, %p56
      %s58 = ssub.s32 %s18, %s25
      %p59 = scmp.eq.s32.totalorder %s58, 0
      %s61 = sadd.s32 %s60, 1
      %s62 = scalar_select %p59, %s60, %s61
      %p65 = pneg %p59
      %p66 = scmp.eq.s32.totalorder %s10, 3
      %p67 = por %p65, %p66
      %p68 = scmp.ne.s32.totalorder %s60, %s63
      %p69 = scmp.eq.s32.totalorder %s10, 0
      %p70 = por %p68, %p69
      %p71 = scmp.ne.s32.totalorder %s60, %s63
      %p72 = scmp.eq.s32.totalorder %s15, 3
      %p73 = por %p71, %p72
      %p74 = scmp.ne.s32.totalorder %s63, %s64
      %p75 = scmp.eq.s32.totalorder %s15, 0
      %p76 = por %p74, %p75
      %p77 = scmp.ne.s32.totalorder %s63, %s64
      %p78 = scmp.eq.s32.totalorder %s16, 3
      %p79 = por %p77, %p78
      %p81 = scmp.ne.s32.totalorder %s64, %s80
      %p82 = scmp.eq.s32.totalorder %s16, 0
      %p83 = por %p81, %p82
      %s85 = sadd.s32 %s84, 1
      %p88 = scmp.eq.s32.totalorder %s10, 3
      %p89 = scmp.ne.s32.totalorder %s84, %s86
      %p90 = scmp.eq.s32.totalorder %s10, 0
      %p91 = por %p89, %p90
      %p92 = scmp.ne.s32.totalorder %s84, %s86
      %p93 = scmp.eq.s32.totalorder %s15, 3
      %p94 = por %p92, %p93
      %p95 = scmp.ne.s32.totalorder %s86, %s87
      %p96 = scmp.eq.s32.totalorder %s15, 0
      %p97 = por %p95, %p96
      %p98 = scmp.ne.s32.totalorder %s86, %s87
      %p99 = scmp.eq.s32.totalorder %s16, 3
      %p100 = por %p98, %p99
      %p102 = scmp.ne.s32.totalorder %s87, %s101
      %p103 = scmp.eq.s32.totalorder %s16, 0
      %p104 = por %p102, %p103
      %s105 = ssub.s32 %s17, %s29
      %p106 = scmp.eq.s32.totalorder %s105, 0
      %s108 = sadd.s32 %s107, 1
      %s109 = scalar_select %p106, %s107, %s108
      %p112 = pneg %p106
      %p113 = scmp.eq.s32.totalorder %s10, 3
      %p114 = por %p112, %p113
      %p115 = scmp.ne.s32.totalorder %s107, %s110
      %p116 = scmp.eq.s32.totalorder %s10, 0
      %p117 = por %p115, %p116
      %p118 = scmp.ne.s32.totalorder %s107, %s110
      %p119 = scmp.eq.s32.totalorder %s15, 3
      %p120 = por %p118, %p119
      %p121 = scmp.ne.s32.totalorder %s110, %s111
      %p122 = scmp.eq.s32.totalorder %s15, 0
      %p123 = por %p121, %p122
      %p124 = scmp.ne.s32.totalorder %s110, %s111
      %p125 = scmp.eq.s32.totalorder %s16, 3
      %p126 = por %p124, %p125
      %p128 = scmp.ne.s32.totalorder %s111, %s127
      %p129 = scmp.eq.s32.totalorder %s16, 0
      %p130 = por %p128, %p129
      %s131 = ssub.s32 %s17, %s29
      %p132 = scmp.eq.s32.totalorder %s131, 0
      %s134 = sadd.s32 %s133, 1
      %s135 = scalar_select %p132, %s133, %s134
      %p138 = pneg %p132
      %p139 = scmp.eq.s32.totalorder %s10, 3
      %p140 = por %p138, %p139
      %p141 = scmp.ne.s32.totalorder %s133, %s136
      %p142 = scmp.eq.s32.totalorder %s10, 0
      %p143 = por %p141, %p142
      %p144 = scmp.ne.s32.totalorder %s133, %s136
      %p145 = scmp.eq.s32.totalorder %s15, 3
      %p146 = por %p144, %p145
      %p147 = scmp.ne.s32.totalorder %s136, %s137
      %p148 = scmp.eq.s32.totalorder %s15, 0
      %p149 = por %p147, %p148
      %p150 = scmp.ne.s32.totalorder %s136, %s137
      %p151 = scmp.eq.s32.totalorder %s16, 3
      %p152 = por %p150, %p151
      %p154 = scmp.ne.s32.totalorder %s137, %s153
      %p155 = scmp.eq.s32.totalorder %s16, 0
      %p156 = por %p154, %p155
      %p157 = scmp.le.s32.totalorder 1, %s10
      %p158 = scmp.lt.s32.totalorder %s10, 5
      %p159 = pnand %p157, %p158
      %p160 = pneg %p159
      // Predicated region
      $region9: #{transformer_forward.13} parent=5 // pred_check
        _
      $region10: #{transformer_forward.13} parent=5 // pred_check_branch
        %162 = sbr.rel (%p159) target = $region12
      $region11: #{transformer_forward.13} parent=5 // pred_region
        %s163 = ssub.s32 %s10, 1
        // Predicated region
        $region13: #{transformer_forward.13} parent=11 // pred_check
          %p164 = pneg %p97
        $region14: #{transformer_forward.13} parent=11 // pred_check_branch
          %166 = sbr.rel (%p164) target = $region16
        $region15: #{transformer_forward.13} parent=11 // pred_region
          _
        $region16: #{transformer_forward.13} parent=11 // pred_fallthru
          _
        // Predicated region
        $region17: #{transformer_forward.13} parent=11 // pred_check
          %p167 = pneg %p123
        $region18: #{transformer_forward.13} parent=11 // pred_check_branch
          %169 = sbr.rel (%p167) target = $region20
        $region19: #{transformer_forward.13} parent=11 // pred_region
          %p170 = scmp.lt.s32.totalorder %s19, 0
          %s171 = scalar_select %p170, %s19, 0
          %s172 = smul.addr %s171, 8
          %s173 = scalar_lea.vmem %s3, %s172
        $region20: #{transformer_forward.13} parent=11 // pred_fallthru
          _
      $region12: #{transformer_forward.13} parent=5 // pred_fallthru
        _
      %p174 = scmp.lt.s32.totalorder %s10, 4
      // Predicated region
      $region21: #{transformer_forward.13} parent=5 // pred_check
        %p175 = pneg %p174
      $region22: #{transformer_forward.13} parent=5 // pred_check_branch
        %177 = sbr.rel (%p175) target = $region24
      $region23: #{transformer_forward.13} parent=5 // pred_region
        // Predicated region
        $region25: #{transformer_forward.13} parent=23 // pred_check
          %p178 = pneg %p44
        $region26: #{transformer_forward.13} parent=23 // pred_check_branch
          %180 = sbr.rel (%p178) target = $region28
        $region27: #{transformer_forward.13} parent=23 // pred_region
          %s181 = sand.u32 %s34, 1
          %s182 = sand.u32 %s34, 1
          %s183 = smul.addr %s182, 16
          %s184 = scalar_lea.vmem [#allocation3], %s183
          %s185 = sadd.s32 %s17, %s18
          %s186 = smul.addr %s185, 8
          %s187 = scalar_lea.vmem %s0, %s186
          // Predicated region
          $region29: #{transformer_forward.13} parent=27 // pred_check
            _
          $region30: #{transformer_forward.13} parent=27 // pred_check_branch
            %189 = sbr.rel (0) target = $region32
          $region31: #{transformer_forward.13} parent=27 // pred_region
            // Predicated region
            $region33: #{transformer_forward.13} parent=31 // pred_check
              _
            $region34: #{transformer_forward.13} parent=31 // pred_check_branch
              %191 = sbr.rel (0) target = $region36
            $region35: #{transformer_forward.13} parent=31 // pred_region
              // Predicated region
              $region48: #{transformer_forward.13} parent=35 // pred_check
                _
              $region49: #{transformer_forward.13} parent=35 // pred_check_branch
                %209 = sbr.rel (0) target = $region51
              $region50: #{transformer_forward.13} parent=35 // pred_region
                loop: start=0, step=1, limit=1
                $region52: #{transformer_forward.13} parent=50 // loop_pre_header
                  _
                $region53: #{transformer_forward.13} parent=50 // loop_header
                  %s211 = sphi 0, %s215
                  %p212 = scmp.ge.s32.totalorder %s211, 1
                  %s216 = sphi %s187, %s187
                  %s217 = sphi %s184, %s184
                $region54: #{transformer_forward.13} parent=50 // loop_header_branch
                  %214 = sbr.rel (%p212) target = $region58
                $region55: #{transformer_forward.13} parent=50 // loop_body
                  %v218 = vld [vmem:[%s216] sm:$0xff]
                  %219 = vst [vmem:[%s217] sm:$0xff] %v218
                  %v220 = vld [vmem:[%s216 + $0x20] sm:$0xff]
                  %221 = vst [vmem:[%s217 + $0x8] sm:$0xff] %v220
                $region56: #{transformer_forward.13} parent=50 // loop_footer
                  %s215 = sadd.s32 1, %s211
                $region57: #{transformer_forward.13} parent=50 // loop_footer_branch
                  %210 = sbr.rel target = $region53
                $region58: #{transformer_forward.13} parent=50 // loop_exit
                  _
              $region51: #{transformer_forward.13} parent=35 // pred_fallthru
                _
              // Predicated region
              $region59: #{transformer_forward.13} parent=35 // pred_check
                _
              $region60: #{transformer_forward.13} parent=35 // pred_check_branch
                %223 = sbr.rel target = $region62
              $region61: #{transformer_forward.13} parent=35 // pred_region
                _
              $region62: #{transformer_forward.13} parent=35 // pred_fallthru
                _
            $region36: #{transformer_forward.13} parent=31 // pred_fallthru
              _
            // Predicated region
            $region37: #{transformer_forward.13} parent=31 // pred_check
              _
            $region38: #{transformer_forward.13} parent=31 // pred_check_branch
              %193 = sbr.rel target = $region40
            $region39: #{transformer_forward.13} parent=31 // pred_region
              %s195 = ssub.s32 256, 1
              loop: start=0, step=1, limit=1
              $region41: #{transformer_forward.13} parent=39 // loop_pre_header
                _
              $region42: #{transformer_forward.13} parent=39 // loop_header
                %s197 = sphi 0, %s201
                %p198 = scmp.ge.s32.totalorder %s197, 1
                %s202 = sphi %s187, %s187
                %s203 = sphi %s184, %s184
              $region43: #{transformer_forward.13} parent=39 // loop_header_branch
                %200 = sbr.rel (%p198) target = $region47
              $region44: #{transformer_forward.13} parent=39 // loop_body
                %v204 = vld [vmem:[%s202] sm:%s195]
                %205 = vst [vmem:[%s203] sm:%s195] %v204
                %v206 = vld [vmem:[%s202 + $0x20] sm:%s195]
                %207 = vst [vmem:[%s203 + $0x8] sm:%s195] %v206
              $region45: #{transformer_forward.13} parent=39 // loop_footer
                %s201 = sadd.s32 1, %s197
              $region46: #{transformer_forward.13} parent=39 // loop_footer_branch
                %196 = sbr.rel target = $region42
              $region47: #{transformer_forward.13} parent=39 // loop_exit
                _
            $region40: #{transformer_forward.13} parent=31 // pred_fallthru
              _
          $region32: #{transformer_forward.13} parent=27 // pred_fallthru
            _
          %224 = vnop
        $region28: #{transformer_forward.13} parent=23 // pred_fallthru
          _
        // Predicated region
        $region63: #{transformer_forward.13} parent=23 // pred_check
          %p225 = pneg %p70
        $region64: #{transformer_forward.13} parent=23 // pred_check_branch
          %227 = sbr.rel (%p225) target = $region66
        $region65: #{transformer_forward.13} parent=23 // pred_region
          %p228 = scmp.lt.s32.totalorder %s18, 3
          %s229 = scalar_select %p228, %s18, 3
          %s230 = smul.addr %s229, 8
          %s231 = scalar_lea.vmem %s1, %s230
        $region66: #{transformer_forward.13} parent=23 // pred_fallthru
          _
      $region24: #{transformer_forward.13} parent=5 // pred_fallthru
        _
      %p232 = scmp.le.s32.totalorder 1, %s10
      %p233 = scmp.lt.s32.totalorder %s10, 5
      %p234 = pnand %p232, %p233
      %p235 = pneg %p234
      // Predicated region
      $region67: #{transformer_forward.13} parent=5 // pred_check
        _
      $region68: #{transformer_forward.13} parent=5 // pred_check_branch
        %237 = sbr.rel (%p234) target = $region70
      $region69: #{transformer_forward.13} parent=5 // pred_region
        %s238 = ssub.s32 %s10, 1
        %s239 = sand.u32 %s37, 1
        %s240 = sand.u32 %s37, 1
        %s241 = smul.addr %s240, 16
        %s242 = scalar_lea.vmem [#allocation3], %s241
        // Predicated region
        $region71: #{transformer_forward.13} parent=69 // pred_check
          %p243 = pneg %p50
        $region72: #{transformer_forward.13} parent=69 // pred_check_branch
          %245 = sbr.rel (%p243) target = $region74
        $region73: #{transformer_forward.13} parent=69 // pred_region
          _
        $region74: #{transformer_forward.13} parent=69 // pred_fallthru
          _
        %s246 = sand.u32 %s37, 1
        %s247 = sand.u32 %s37, 1
        %s248 = smul.addr %s247, 16
        %s249 = scalar_lea.vmem [#allocation3], %s248
        %p250 = pneg %p50
        %p251 = pneg %p47
        %p252 = scmp.lt.s32.totalorder %s20, 3
        %s253 = scalar_select %p252, %s20, 3
        %s254 = smul.addr %s253, 8
        %s255 = scalar_lea.vmem %s1, %s254
        %p256 = pneg %p76
        %p257 = pneg %p73
        %p258 = pneg %p97
        %p259 = pneg %p94
        %p260 = scmp.lt.s32.totalorder %s19, 0
        %s261 = scalar_select %p260, %s19, 0
        %s262 = smul.addr %s261, 8
        %s263 = scalar_lea.vmem %s3, %s262
        %p264 = pneg %p123
        %p265 = pneg %p120
        %p266 = pneg %p149
        %p267 = pneg %p146
        %p268 = scmp.lt.s32.totalorder %s19, 0
        %s269 = scalar_select %p268, %s19, 0
        %s270 = smul.addr %s269, 8
        %s271 = scalar_lea.vmem %s4, %s270
        %p272 = scmp.lt.s32.totalorder %s20, 3
        %s273 = scalar_select %p272, %s20, 3
        %s274 = smul.addr %s273, 8
        %s275 = scalar_lea.vmem %s1, %s274
        %p276 = scmp.lt.s32.totalorder %s19, 0
        %s277 = scalar_select %p276, %s19, 0
        %s278 = smul.addr %s277, 8
        %s279 = scalar_lea.vmem %s3, %s278
        %p280 = scmp.lt.s32.totalorder %s19, 0
        %s281 = scalar_select %p280, %s19, 0
        %s282 = smul.addr %s281, 8
        %s283 = scalar_lea.vmem %s4, %s282
        %p284 = scmp.eq.s32.totalorder %s20, 0
        // Predicated region
        $region75: #{transformer_forward.13} parent=69 // pred_check
          %p285 = pneg %p284
        $region76: #{transformer_forward.13} parent=69 // pred_check_branch
          %287 = sbr.rel (%p285) target = $region78
        $region77: #{transformer_forward.13} parent=69 // pred_region
          %v288 = vld [vmem:[%s279] sm:$0xff]
          %v289 = vld [vmem:[%s279 + $0x8] sm:$0xff]
          %v290 = vld [vmem:[%s2] sm:$0x1]
          %v292 = vperm.slane %v290, 0
          %v294 = vadd.f32 %v288, %v292
          %v295 = vadd.f32 %v289, %v292
          %vm296 = vcmask 261120
          %297 = vst.msk [vmem:[#allocation2] sm:$0xff] %vm296, %v294
          %298 = vst.msk [vmem:[#allocation2 + $0x8] sm:$0xff] %vm296, %v295
        $region78: #{transformer_forward.13} parent=69 // pred_fallthru
          _
        %v299 = vld [vmem:[%s275] sm:$0xff]
        %v300 = vld [vmem:[#allocation2] sm:$0xff]
        %v301 = vld [vmem:[%s242] sm:$0xff]
        %vm302 = vcmask 64512
        %v304 = vsel %vm302, %v301, 0
        %306 = vmatpush.msra.mxu0 0.0
        %307 = vmatpush.msra.mxu0 0.0
        %308 = vmatpush.msra.mxu0 0.0
        %309 = vmatpush.msra.mxu0 0.0
        %310 = vmatpush.msra.mxu0 0.0
        %311 = vmatpush.msra.mxu0 0.0
        %312 = vmatpush.msra.mxu0 0.0
        %313 = vmatpush.msra.mxu0 0.0
        %314 = vmatpush.msra.mxu0 0.0
        %315 = vmatpush.msra.mxu0 0.0
        %316 = vmatpush.msra.mxu0 0.0
        %317 = vmatpush.msra.mxu0 0.0
        %318 = vmatpush.msra.mxu0 0.0
        %319 = vmatpush.msra.mxu0 0.0
        %320 = vmatpush.msra.mxu0 0.0
        %321 = vmatpush.msra.mxu0 %v299
        %322 = vmatmul.f32.gmra.mxu0 %v304
        %v323 = vpop.f32.mrf.mxu0
        %v324 = vadd.f32 0.0, %v323
        %325 = vdwg.mxu0
        %v326 = vadd.f32 %v300, %v324
        %vm327 = vcmask 261120
        %328 = vst.msk [vmem:[#allocation2] sm:$0xff] %vm327, %v326
        %s329 = scalar_lea.vmem [#allocation2], 8
        %v330 = vld [vmem:[%s329] sm:$0xff]
        %s331 = scalar_lea.vmem %s242, 8 [#allocation3]
        %v332 = vld [vmem:[%s331] sm:$0xff]
        %v334 = vsel %vm302, %v332, 0
        %336 = vmatpush.msra.mxu0 0.0
        %337 = vmatpush.msra.mxu0 0.0
        %338 = vmatpush.msra.mxu0 0.0
        %339 = vmatpush.msra.mxu0 0.0
        %340 = vmatpush.msra.mxu0 0.0
        %341 = vmatpush.msra.mxu0 0.0
        %342 = vmatpush.msra.mxu0 0.0
        %343 = vmatpush.msra.mxu0 0.0
        %344 = vmatpush.msra.mxu0 0.0
        %345 = vmatpush.msra.mxu0 0.0
        %346 = vmatpush.msra.mxu0 0.0
        %347 = vmatpush.msra.mxu0 0.0
        %348 = vmatpush.msra.mxu0 0.0
        %349 = vmatpush.msra.mxu0 0.0
        %350 = vmatpush.msra.mxu0 0.0
        %351 = vmatpush.msra.mxu0 %v299
        %352 = vmatmul.f32.gmra.mxu0 %v334
        %v353 = vpop.f32.mrf.mxu0
        %v354 = vadd.f32 0.0, %v353
        %355 = vdwg.mxu0
        %v356 = vadd.f32 %v330, %v354
        %357 = vst.msk [vmem:[%s329] sm:$0xff] %vm327, %v356
        %p358 = scmp.eq.s32.totalorder %s20, 3
        // Predicated region
        $region79: #{transformer_forward.13} parent=69 // pred_check
          %p359 = pneg %p358
        $region80: #{transformer_forward.13} parent=69 // pred_check_branch
          %361 = sbr.rel (%p359) target = $region82
        $region81: #{transformer_forward.13} parent=69 // pred_region
          %v362 = vld [vmem:[#allocation2] sm:$0xff]
          %v363 = vld [vmem:[#allocation2 + $0x8] sm:$0xff]
          %364 = vst.msk [vmem:[%s283] sm:$0xff] %vm327, %v362
          %365 = vst.msk [vmem:[%s283 + $0x8] sm:$0xff] %vm327, %v363
        $region82: #{transformer_forward.13} parent=69 // pred_fallthru
          _
        %p366 = scmp.lt.s32.totalorder %s19, 0
        %s367 = scalar_select %p366, %s19, 0
        %s368 = smul.addr %s367, 8
        %s369 = scalar_lea.vmem %s4, %s368
        // Predicated region
        $region83: #{transformer_forward.13} parent=69 // pred_check
          %p370 = pneg %p146
        $region84: #{transformer_forward.13} parent=69 // pred_check_branch
          %372 = sbr.rel (%p370) target = $region86
        $region85: #{transformer_forward.13} parent=69 // pred_region
          _
        $region86: #{transformer_forward.13} parent=69 // pred_fallthru
          _
        // Predicated region
        $region87: #{transformer_forward.13} parent=69 // pred_check
          %p373 = pneg %p146
        $region88: #{transformer_forward.13} parent=69 // pred_check_branch
          %375 = sbr.rel (%p373) target = $region90
        $region89: #{transformer_forward.13} parent=69 // pred_region
          %p376 = scmp.lt.s32.totalorder %s19, 0
          %s377 = scalar_select %p376, %s19, 0
          %s378 = smul.addr %s377, 8
          %s379 = scalar_lea.vmem %s4, %s378
        $region90: #{transformer_forward.13} parent=69 // pred_fallthru
          _
      $region70: #{transformer_forward.13} parent=5 // pred_fallthru
        _
      %p380 = scmp.le.s32.totalorder 2, %s10
      // Predicated region
      $region91: #{transformer_forward.13} parent=5 // pred_check
        %p381 = pneg %p380
      $region92: #{transformer_forward.13} parent=5 // pred_check_branch
        %383 = sbr.rel (%p381) target = $region94
      $region93: #{transformer_forward.13} parent=5 // pred_region
        %s384 = ssub.s32 %s10, 2
      $region94: #{transformer_forward.13} parent=5 // pred_fallthru
        _
    $region6: #{transformer_forward.13} parent=1 // loop_footer
      %s14 = sadd.s32 1, %s10
    $region7: #{transformer_forward.13} parent=1 // loop_footer_branch
      %9 = sbr.rel target = $region3
    $region8: #{transformer_forward.13} parent=1 // loop_exit
      _

// kernel: transformer_forward.12
$region0: #{transformer_forward.12}
  #allocation0 [shape = 'u32[]', space=smem, size = 0x4, offset = 0x4, fixed_abs, tag = 'smem constant byte address 0x4 - core index']
  #allocation1 [shape = 'u32[72,128]{1,0:T(1,128)}', space=vmem, size = 0x9000, scoped, tag = 'internal scratch']
  #allocation2 [shape = 'f32[2,4,8,8]{3,2,1,0:T(8,128)}', space=vmem, size = 0x8000, scoped, tag = 'scratch operand']
  %s0 = inlined_call_operand.vmem [shape: f32[2,4,8,8], index: 0, kind: input, shape index: {}]
  %s1 = inlined_call_operand.vmem [shape: f32[2,4,8,8], index: 1, kind: input, shape index: {}]
  %s2 = inlined_call_operand.vmem [shape: f32[2,4,8,8], index: 2, kind: input, shape index: {}]
  %s3 = inlined_call_operand.vmem [shape: f32[2,4,8,8], index: 3, kind: output, shape index: {}]
  %s4 = sld [smem:[#allocation0]]
  $region30: #{transformer_forward.12} parent=0
    _
  %s6 = ssub.s32 1, %s4
  %s7 = scalar_select 0, %s6, %s4
  // Predicated region
  $region2: #{transformer_forward.12} parent=0 // pred_check
    _
  $region3: #{transformer_forward.12} parent=0 // pred_check_branch
    %9 = sbr.rel (0) target = $region5
  $region4: #{transformer_forward.12} parent=0 // pred_region
    _
  $region5: #{transformer_forward.12} parent=0 // pred_fallthru
    _
  // Predicated region
  $region6: #{transformer_forward.12} parent=0 // pred_check
    _
  $region7: #{transformer_forward.12} parent=0 // pred_check_branch
    %11 = sbr.rel (0) target = $region9
  $region8: #{transformer_forward.12} parent=0 // pred_region
    _
  $region9: #{transformer_forward.12} parent=0 // pred_fallthru
    _
  // Predicated region
  $region10: #{transformer_forward.12} parent=0 // pred_check
    _
  $region11: #{transformer_forward.12} parent=0 // pred_check_branch
    %13 = sbr.rel (0) target = $region13
  $region12: #{transformer_forward.12} parent=0 // pred_region
    _
  $region13: #{transformer_forward.12} parent=0 // pred_fallthru
    _
  %p14 = scmp.eq.s32.totalorder 0, 0
  // Predicated region
  $region14: #{transformer_forward.12} parent=0 // pred_check
    %p15 = pneg %p14
  $region15: #{transformer_forward.12} parent=0 // pred_check_branch
    %17 = sbr.rel (%p15) target = $region17
  $region16: #{transformer_forward.12} parent=0 // pred_region
    %vm18 = vcmask 64512
    %19 = vst.msk [vmem:[#allocation2] sm:$0xff] %vm18, 0.0
    %20 = vst.msk [vmem:[#allocation2 + $0x8] sm:$0xff] %vm18, 0.0
    %21 = vst.msk [vmem:[#allocation2 + $0x10] sm:$0xff] %vm18, 0.0
    %22 = vst.msk [vmem:[#allocation2 + $0x18] sm:$0xff] %vm18, 0.0
    %23 = vst.msk [vmem:[#allocation2 + $0x20] sm:$0xff] %vm18, 0.0
    %24 = vst.msk [vmem:[#allocation2 + $0x28] sm:$0xff] %vm18, 0.0
    %25 = vst.msk [vmem:[#allocation2 + $0x30] sm:$0xff] %vm18, 0.0
    %26 = vst.msk [vmem:[#allocation2 + $0x38] sm:$0xff] %vm18, 0.0
  $region17: #{transformer_forward.12} parent=0 // pred_fallthru
    _
  %v27 = vld [vmem:[%s0] sm:$0xff]
  %v28 = vld [vmem:[%s0 + $0x8] sm:$0xff]
  %v29 = vld [vmem:[%s0 + $0x10] sm:$0xff]
  %v30 = vld [vmem:[%s0 + $0x18] sm:$0xff]
  %v31 = vld [vmem:[%s0 + $0x20] sm:$0xff]
  %v32 = vld [vmem:[%s0 + $0x28] sm:$0xff]
  %v33 = vld [vmem:[%s0 + $0x30] sm:$0xff]
  %v34 = vld [vmem:[%s0 + $0x38] sm:$0xff]
  %v35 = vld [vmem:[%s1] sm:$0xff]
  %v36 = vld [vmem:[%s1 + $0x8] sm:$0xff]
  %v37 = vld [vmem:[%s1 + $0x10] sm:$0xff]
  %v38 = vld [vmem:[%s1 + $0x18] sm:$0xff]
  %v39 = vld [vmem:[%s1 + $0x20] sm:$0xff]
  %v40 = vld [vmem:[%s1 + $0x28] sm:$0xff]
  %v41 = vld [vmem:[%s1 + $0x30] sm:$0xff]
  %v42 = vld [vmem:[%s1 + $0x38] sm:$0xff]
  %v43 = vld [vmem:[%s2] sm:$0xff]
  %v44 = vld [vmem:[%s2 + $0x8] sm:$0xff]
  %v45 = vld [vmem:[%s2 + $0x10] sm:$0xff]
  %v46 = vld [vmem:[%s2 + $0x18] sm:$0xff]
  %v47 = vld [vmem:[%s2 + $0x20] sm:$0xff]
  %v48 = vld [vmem:[%s2 + $0x28] sm:$0xff]
  %v49 = vld [vmem:[%s2 + $0x30] sm:$0xff]
  %v50 = vld [vmem:[%s2 + $0x38] sm:$0xff]
  %vm51 = vcmask 64512
  %v53 = vsel %vm51, %v27, 0
  %v56 = vsel %vm51, %v35, 0
  %58 = vmatpush.xpose.msra.mxu0 0.0
  %59 = vmatpush.xpose.msra.mxu0 0.0
  %60 = vmatpush.xpose.msra.mxu0 0.0
  %61 = vmatpush.xpose.msra.mxu0 0.0
  %62 = vmatpush.xpose.msra.mxu0 0.0
  %63 = vmatpush.xpose.msra.mxu0 0.0
  %64 = vmatpush.xpose.msra.mxu0 0.0
  %65 = vmatpush.xpose.msra.mxu0 0.0
  %66 = vmatpush.xpose.msra.mxu0 0.0
  %67 = vmatpush.xpose.msra.mxu0 0.0
  %68 = vmatpush.xpose.msra.mxu0 0.0
  %69 = vmatpush.xpose.msra.mxu0 0.0
  %70 = vmatpush.xpose.msra.mxu0 0.0
  %71 = vmatpush.xpose.msra.mxu0 0.0
  %72 = vmatpush.xpose.msra.mxu0 0.0
  %73 = vmatpush.xpose.msra.mxu0 %v56
  %74 = vmatmul.f32.gmra.mxu0 %v53
  %v75 = vpop.f32.mrf.mxu0
  %v76 = vadd.f32 0.0, %v75
  %77 = vdwg.mxu0
  %v79 = vsel %vm51, %v28, 0
  %v82 = vsel %vm51, %v36, 0
  %84 = vmatpush.xpose.msra.mxu0 0.0
  %85 = vmatpush.xpose.msra.mxu0 0.0
  %86 = vmatpush.xpose.msra.mxu0 0.0
  %87 = vmatpush.xpose.msra.mxu0 0.0
  %88 = vmatpush.xpose.msra.mxu0 0.0
  %89 = vmatpush.xpose.msra.mxu0 0.0
  %90 = vmatpush.xpose.msra.mxu0 0.0
  %91 = vmatpush.xpose.msra.mxu0 0.0
  %92 = vmatpush.xpose.msra.mxu0 0.0
  %93 = vmatpush.xpose.msra.mxu0 0.0
  %94 = vmatpush.xpose.msra.mxu0 0.0
  %95 = vmatpush.xpose.msra.mxu0 0.0
  %96 = vmatpush.xpose.msra.mxu0 0.0
  %97 = vmatpush.xpose.msra.mxu0 0.0
  %98 = vmatpush.xpose.msra.mxu0 0.0
  %99 = vmatpush.xpose.msra.mxu0 %v82
  %100 = vmatmul.f32.gmra.mxu0 %v79
  %v101 = vpop.f32.mrf.mxu0
  %v102 = vadd.f32 0.0, %v101
  %103 = vdwg.mxu0
  %v105 = vsel %vm51, %v29, 0
  %v108 = vsel %vm51, %v37, 0
  %110 = vmatpush.xpose.msra.mxu0 0.0
  %111 = vmatpush.xpose.msra.mxu0 0.0
  %112 = vmatpush.xpose.msra.mxu0 0.0
  %113 = vmatpush.xpose.msra.mxu0 0.0
  %114 = vmatpush.xpose.msra.mxu0 0.0
  %115 = vmatpush.xpose.msra.mxu0 0.0
  %116 = vmatpush.xpose.msra.mxu0 0.0
  %117 = vmatpush.xpose.msra.mxu0 0.0
  %118 = vmatpush.xpose.msra.mxu0 0.0
  %119 = vmatpush.xpose.msra.mxu0 0.0
  %120 = vmatpush.xpose.msra.mxu0 0.0
  %121 = vmatpush.xpose.msra.mxu0 0.0
  %122 = vmatpush.xpose.msra.mxu0 0.0
  %123 = vmatpush.xpose.msra.mxu0 0.0
  %124 = vmatpush.xpose.msra.mxu0 0.0
  %125 = vmatpush.xpose.msra.mxu0 %v108
  %126 = vmatmul.f32.gmra.mxu0 %v105
  %v127 = vpop.f32.mrf.mxu0
  %v128 = vadd.f32 0.0, %v127
  %129 = vdwg.mxu0
  %v131 = vsel %vm51, %v30, 0
  %v134 = vsel %vm51, %v38, 0
  %136 = vmatpush.xpose.msra.mxu0 0.0
  %137 = vmatpush.xpose.msra.mxu0 0.0
  %138 = vmatpush.xpose.msra.mxu0 0.0
  %139 = vmatpush.xpose.msra.mxu0 0.0
  %140 = vmatpush.xpose.msra.mxu0 0.0
  %141 = vmatpush.xpose.msra.mxu0 0.0
  %142 = vmatpush.xpose.msra.mxu0 0.0
  %143 = vmatpush.xpose.msra.mxu0 0.0
  %144 = vmatpush.xpose.msra.mxu0 0.0
  %145 = vmatpush.xpose.msra.mxu0 0.0
  %146 = vmatpush.xpose.msra.mxu0 0.0
  %147 = vmatpush.xpose.msra.mxu0 0.0
  %148 = vmatpush.xpose.msra.mxu0 0.0
  %149 = vmatpush.xpose.msra.mxu0 0.0
  %150 = vmatpush.xpose.msra.mxu0 0.0
  %151 = vmatpush.xpose.msra.mxu0 %v134
  %152 = vmatmul.f32.gmra.mxu0 %v131
  %v153 = vpop.f32.mrf.mxu0
  %v154 = vadd.f32 0.0, %v153
  %155 = vdwg.mxu0
  %v157 = vsel %vm51, %v31, 0
  %v160 = vsel %vm51, %v39, 0
  %162 = vmatpush.xpose.msra.mxu0 0.0
  %163 = vmatpush.xpose.msra.mxu0 0.0
  %164 = vmatpush.xpose.msra.mxu0 0.0
  %165 = vmatpush.xpose.msra.mxu0 0.0
  %166 = vmatpush.xpose.msra.mxu0 0.0
  %167 = vmatpush.xpose.msra.mxu0 0.0
  %168 = vmatpush.xpose.msra.mxu0 0.0
  %169 = vmatpush.xpose.msra.mxu0 0.0
  %170 = vmatpush.xpose.msra.mxu0 0.0
  %171 = vmatpush.xpose.msra.mxu0 0.0
  %172 = vmatpush.xpose.msra.mxu0 0.0
  %173 = vmatpush.xpose.msra.mxu0 0.0
  %174 = vmatpush.xpose.msra.mxu0 0.0
  %175 = vmatpush.xpose.msra.mxu0 0.0
  %176 = vmatpush.xpose.msra.mxu0 0.0
  %177 = vmatpush.xpose.msra.mxu0 %v160
  %178 = vmatmul.f32.gmra.mxu0 %v157
  %v179 = vpop.f32.mrf.mxu0
  %v180 = vadd.f32 0.0, %v179
  %181 = vdwg.mxu0
  %v183 = vsel %vm51, %v32, 0
  %v186 = vsel %vm51, %v40, 0
  %188 = vmatpush.xpose.msra.mxu0 0.0
  %189 = vmatpush.xpose.msra.mxu0 0.0
  %190 = vmatpush.xpose.msra.mxu0 0.0
  %191 = vmatpush.xpose.msra.mxu0 0.0
  %192 = vmatpush.xpose.msra.mxu0 0.0
  %193 = vmatpush.xpose.msra.mxu0 0.0
  %194 = vmatpush.xpose.msra.mxu0 0.0
  %195 = vmatpush.xpose.msra.mxu0 0.0
  %196 = vmatpush.xpose.msra.mxu0 0.0
  %197 = vmatpush.xpose.msra.mxu0 0.0
  %198 = vmatpush.xpose.msra.mxu0 0.0
  %199 = vmatpush.xpose.msra.mxu0 0.0
  %200 = vmatpush.xpose.msra.mxu0 0.0
  %201 = vmatpush.xpose.msra.mxu0 0.0
  %202 = vmatpush.xpose.msra.mxu0 0.0
  %203 = vmatpush.xpose.msra.mxu0 %v186
  %204 = vmatmul.f32.gmra.mxu0 %v183
  %v205 = vpop.f32.mrf.mxu0
  %v206 = vadd.f32 0.0, %v205
  %207 = vdwg.mxu0
  %v209 = vsel %vm51, %v33, 0
  %v212 = vsel %vm51, %v41, 0
  %214 = vmatpush.xpose.msra.mxu0 0.0
  %215 = vmatpush.xpose.msra.mxu0 0.0
  %216 = vmatpush.xpose.msra.mxu0 0.0
  %217 = vmatpush.xpose.msra.mxu0 0.0
  %218 = vmatpush.xpose.msra.mxu0 0.0
  %219 = vmatpush.xpose.msra.mxu0 0.0
  %220 = vmatpush.xpose.msra.mxu0 0.0
  %221 = vmatpush.xpose.msra.mxu0 0.0
  %222 = vmatpush.xpose.msra.mxu0 0.0
  %223 = vmatpush.xpose.msra.mxu0 0.0
  %224 = vmatpush.xpose.msra.mxu0 0.0
  %225 = vmatpush.xpose.msra.mxu0 0.0
  %226 = vmatpush.xpose.msra.mxu0 0.0
  %227 = vmatpush.xpose.msra.mxu0 0.0
  %228 = vmatpush.xpose.msra.mxu0 0.0
  %229 = vmatpush.xpose.msra.mxu0 %v212
  %230 = vmatmul.f32.gmra.mxu0 %v209
  %v231 = vpop.f32.mrf.mxu0
  %v232 = vadd.f32 0.0, %v231
  %233 = vdwg.mxu0
  %v235 = vsel %vm51, %v34, 0
  %v238 = vsel %vm51, %v42, 0
  %240 = vmatpush.xpose.msra.mxu0 0.0
  %241 = vmatpush.xpose.msra.mxu0 0.0
  %242 = vmatpush.xpose.msra.mxu0 0.0
  %243 = vmatpush.xpose.msra.mxu0 0.0
  %244 = vmatpush.xpose.msra.mxu0 0.0
  %245 = vmatpush.xpose.msra.mxu0 0.0
  %246 = vmatpush.xpose.msra.mxu0 0.0
  %247 = vmatpush.xpose.msra.mxu0 0.0
  %248 = vmatpush.xpose.msra.mxu0 0.0
  %249 = vmatpush.xpose.msra.mxu0 0.0
  %250 = vmatpush.xpose.msra.mxu0 0.0
  %251 = vmatpush.xpose.msra.mxu0 0.0
  %252 = vmatpush.xpose.msra.mxu0 0.0
  %253 = vmatpush.xpose.msra.mxu0 0.0
  %254 = vmatpush.xpose.msra.mxu0 0.0
  %255 = vmatpush.xpose.msra.mxu0 %v238
  %256 = vmatmul.f32.gmra.mxu0 %v235
  %v257 = vpop.f32.mrf.mxu0
  %v258 = vadd.f32 0.0, %v257
  %259 = vdwg.mxu0
  %v260 = vmul.f32 %v76, 0.35355338
  %v261 = vmul.f32 %v102, 0.35355338
  %v262 = vmul.f32 %v128, 0.35355338
  %v263 = vmul.f32 %v154, 0.35355338
  %v264 = vmul.f32 %v180, 0.35355338
  %v265 = vmul.f32 %v206, 0.35355338
  %v266 = vmul.f32 %v232, 0.35355338
  %v267 = vmul.f32 %v258, 0.35355338
  %s268 = smul.u32 0, 8
  %v269 = vlaneseq
  %v270 = vshrl.u32 %v269, 7
  %v271 = vstv %s268
  %v272 = vadd.s32 %v271, %v270
  %s273 = smul.u32 0, 8
  %v274 = vlaneseq
  %v275 = vand.u32 %v274, 127
  %v276 = vstv %s273
  %v277 = vadd.s32 %v276, %v275
  %vm278 = vcmp.le.s32.totalorder %v277, %v272
  %v279 = vsel %vm278, 1, 0
  %vm280 = vcmp.eq.s32.totalorder %v279, 1
  %v281 = vsel %vm280, %v260, -10000.0
  %v282 = vsel %vm280, %v261, -10000.0
  %v283 = vsel %vm280, %v262, -10000.0
  %v284 = vsel %vm280, %v263, -10000.0
  %v285 = vsel %vm280, %v264, -10000.0
  %v286 = vsel %vm280, %v265, -10000.0
  %v287 = vsel %vm280, %v266, -10000.0
  %v288 = vsel %vm280, %v267, -10000.0
  %v289 = vsel %vm51, %v281, -inf
  %v290 = vsel %vm51, %v282, -inf
  %v291 = vsel %vm51, %v283, -inf
  %v292 = vmax.f32 %v289, %v291
  %v293 = vsel %vm51, %v284, -inf
  %v294 = vmax.f32 %v290, %v293
  %v295 = vmax.f32 %v292, %v294
  %v296 = vsel %vm51, %v285, -inf
  %v297 = vsel %vm51, %v286, -inf
  %v298 = vsel %vm51, %v287, -inf
  %v299 = vmax.f32 %v296, %v298
  %v300 = vsel %vm51, %v288, -inf
  %v301 = vmax.f32 %v297, %v300
  %v302 = vmax.f32 %v299, %v301
  %v303 = vsub.f32 %v281, %v295
  %v304 = vsub.f32 %v282, %v295
  %v305 = vsub.f32 %v283, %v295
  %v306 = vsub.f32 %v284, %v295
  %v307 = vsub.f32 %v285, %v302
  %v308 = vsub.f32 %v286, %v302
  %v309 = vsub.f32 %v287, %v302
  %v310 = vsub.f32 %v288, %v302
  %v311 = vmul.f32 %v303, 1.442695
  %v312 = vpow.pop %v311
  %v313 = vmul.f32 %v304, 1.442695
  %v314 = vpow.pop %v313
  %v315 = vmul.f32 %v305, 1.442695
  %v316 = vpow.pop %v315
  %v317 = vmul.f32 %v306, 1.442695
  %v318 = vpow.pop %v317
  %v319 = vmul.f32 %v307, 1.442695
  %v320 = vpow.pop %v319
  %v321 = vmul.f32 %v308, 1.442695
  %v322 = vpow.pop %v321
  %v323 = vmul.f32 %v309, 1.442695
  %v324 = vpow.pop %v323
  %v325 = vmul.f32 %v310, 1.442695
  %v326 = vpow.pop %v325
  %v327 = vsel %vm51, %v312, 0.0
  %v328 = vsel %vm51, %v314, 0.0
  %v329 = vadd.f32 %v327, %v328
  %v330 = vsel %vm51, %v316, 0.0
  %v331 = vadd.f32 %v329, %v330
  %v332 = vsel %vm51, %v318, 0.0
  %v333 = vadd.f32 %v331, %v332
  %v334 = vsel %vm51, %v320, 0.0
  %v335 = vsel %vm51, %v322, 0.0
  %v336 = vadd.f32 %v334, %v335
  %v337 = vsel %vm51, %v324, 0.0
  %v338 = vadd.f32 %v336, %v337
  %v339 = vsel %vm51, %v326, 0.0
  %v340 = vadd.f32 %v338, %v339
  %v341 = vrcp.pop %v333
  %v342 = vmul.f32 %v333, %v341
  %v343 = vsub.f32 1.0, %v342
  %v344 = vmul.f32 %v341, %v343
  %v345 = vadd.f32 %v341, %v344
  %vm346 = vweird.f32 %v333
  %vm347 = vweird.f32 %v341
  %vm348 = vmor %vm346, %vm347
  %v349 = vsel %vm348, %v341, %v345
  %v350 = vand.u32 2147483647, %v333
  %vm351 = vcmp.eq.f32.partialorder %v350, 8.507059e+37
  %v352 = vand.u32 %v333, 2147483648
  %v353 = vor.u32 1.1754944e-38, %v352
  %v354 = vsel %vm351, %v353, %v349
  %v355 = vmul.f32 %v312, %v354
  %v356 = vmul.f32 %v314, %v354
  %v357 = vmul.f32 %v316, %v354
  %v358 = vmul.f32 %v318, %v354
  %v359 = vrcp.pop %v340
  %v360 = vmul.f32 %v340, %v359
  %v361 = vsub.f32 1.0, %v360
  %v362 = vmul.f32 %v359, %v361
  %v363 = vadd.f32 %v359, %v362
  %vm364 = vweird.f32 %v340
  %vm365 = vweird.f32 %v359
  %vm366 = vmor %vm364, %vm365
  %v367 = vsel %vm366, %v359, %v363
  %v368 = vand.u32 2147483647, %v340
  %vm369 = vcmp.eq.f32.partialorder %v368, 8.507059e+37
  %v370 = vand.u32 %v340, 2147483648
  %v371 = vor.u32 1.1754944e-38, %v370
  %v372 = vsel %vm369, %v371, %v367
  %v373 = vmul.f32 %v320, %v372
  %v374 = vmul.f32 %v322, %v372
  %v375 = vmul.f32 %v324, %v372
  %v376 = vmul.f32 %v326, %v372
  %v378 = vsel %vm51, %v355, 0
  %380 = vmatpush.msra.mxu0 0.0
  %381 = vmatpush.msra.mxu0 0.0
  %382 = vmatpush.msra.mxu0 0.0
  %383 = vmatpush.msra.mxu0 0.0
  %384 = vmatpush.msra.mxu0 0.0
  %385 = vmatpush.msra.mxu0 0.0
  %386 = vmatpush.msra.mxu0 0.0
  %387 = vmatpush.msra.mxu0 0.0
  %388 = vmatpush.msra.mxu0 0.0
  %389 = vmatpush.msra.mxu0 0.0
  %390 = vmatpush.msra.mxu0 0.0
  %391 = vmatpush.msra.mxu0 0.0
  %392 = vmatpush.msra.mxu0 0.0
  %393 = vmatpush.msra.mxu0 0.0
  %394 = vmatpush.msra.mxu0 0.0
  %395 = vmatpush.msra.mxu0 %v43
  %396 = vmatmul.f32.gmra.mxu0 %v378
  %v397 = vpop.f32.mrf.mxu0
  %v398 = vadd.f32 0.0, %v397
  %399 = vdwg.mxu0
  %v401 = vsel %vm51, %v356, 0
  %403 = vmatpush.msra.mxu0 0.0
  %404 = vmatpush.msra.mxu0 0.0
  %405 = vmatpush.msra.mxu0 0.0
  %406 = vmatpush.msra.mxu0 0.0
  %407 = vmatpush.msra.mxu0 0.0
  %408 = vmatpush.msra.mxu0 0.0
  %409 = vmatpush.msra.mxu0 0.0
  %410 = vmatpush.msra.mxu0 0.0
  %411 = vmatpush.msra.mxu0 0.0
  %412 = vmatpush.msra.mxu0 0.0
  %413 = vmatpush.msra.mxu0 0.0
  %414 = vmatpush.msra.mxu0 0.0
  %415 = vmatpush.msra.mxu0 0.0
  %416 = vmatpush.msra.mxu0 0.0
  %417 = vmatpush.msra.mxu0 0.0
  %418 = vmatpush.msra.mxu0 %v44
  %419 = vmatmul.f32.gmra.mxu0 %v401
  %v420 = vpop.f32.mrf.mxu0
  %v421 = vadd.f32 0.0, %v420
  %422 = vdwg.mxu0
  %v424 = vsel %vm51, %v357, 0
  %426 = vmatpush.msra.mxu0 0.0
  %427 = vmatpush.msra.mxu0 0.0
  %428 = vmatpush.msra.mxu0 0.0
  %429 = vmatpush.msra.mxu0 0.0
  %430 = vmatpush.msra.mxu0 0.0
  %431 = vmatpush.msra.mxu0 0.0
  %432 = vmatpush.msra.mxu0 0.0
  %433 = vmatpush.msra.mxu0 0.0
  %434 = vmatpush.msra.mxu0 0.0
  %435 = vmatpush.msra.mxu0 0.0
  %436 = vmatpush.msra.mxu0 0.0
  %437 = vmatpush.msra.mxu0 0.0
  %438 = vmatpush.msra.mxu0 0.0
  %439 = vmatpush.msra.mxu0 0.0
  %440 = vmatpush.msra.mxu0 0.0
  %441 = vmatpush.msra.mxu0 %v45
  %442 = vmatmul.f32.gmra.mxu0 %v424
  %v443 = vpop.f32.mrf.mxu0
  %v444 = vadd.f32 0.0, %v443
  %445 = vdwg.mxu0
  %v447 = vsel %vm51, %v358, 0
  %449 = vmatpush.msra.mxu0 0.0
  %450 = vmatpush.msra.mxu0 0.0
  %451 = vmatpush.msra.mxu0 0.0
  %452 = vmatpush.msra.mxu0 0.0
  %453 = vmatpush.msra.mxu0 0.0
  %454 = vmatpush.msra.mxu0 0.0
  %455 = vmatpush.msra.mxu0 0.0
  %456 = vmatpush.msra.mxu0 0.0
  %457 = vmatpush.msra.mxu0 0.0
  %458 = vmatpush.msra.mxu0 0.0
  %459 = vmatpush.msra.mxu0 0.0
  %460 = vmatpush.msra.mxu0 0.0
  %461 = vmatpush.msra.mxu0 0.0
  %462 = vmatpush.msra.mxu0 0.0
  %463 = vmatpush.msra.mxu0 0.0
  %464 = vmatpush.msra.mxu0 %v46
  %465 = vmatmul.f32.gmra.mxu0 %v447
  %v466 = vpop.f32.mrf.mxu0
  %v467 = vadd.f32 0.0, %v466
  %468 = vdwg.mxu0
  %v470 = vsel %vm51, %v373, 0
  %472 = vmatpush.msra.mxu0 0.0
  %473 = vmatpush.msra.mxu0 0.0
  %474 = vmatpush.msra.mxu0 0.0
  %475 = vmatpush.msra.mxu0 0.0
  %476 = vmatpush.msra.mxu0 0.0
  %477 = vmatpush.msra.mxu0 0.0
  %478 = vmatpush.msra.mxu0 0.0
  %479 = vmatpush.msra.mxu0 0.0
  %480 = vmatpush.msra.mxu0 0.0
  %481 = vmatpush.msra.mxu0 0.0
  %482 = vmatpush.msra.mxu0 0.0
  %483 = vmatpush.msra.mxu0 0.0
  %484 = vmatpush.msra.mxu0 0.0
  %485 = vmatpush.msra.mxu0 0.0
  %486 = vmatpush.msra.mxu0 0.0
  %487 = vmatpush.msra.mxu0 %v47
  %488 = vmatmul.f32.gmra.mxu0 %v470
  %v489 = vpop.f32.mrf.mxu0
  %v490 = vadd.f32 0.0, %v489
  %491 = vdwg.mxu0
  %v493 = vsel %vm51, %v374, 0
  %495 = vmatpush.msra.mxu0 0.0
  %496 = vmatpush.msra.mxu0 0.0
  %497 = vmatpush.msra.mxu0 0.0
  %498 = vmatpush.msra.mxu0 0.0
  %499 = vmatpush.msra.mxu0 0.0
  %500 = vmatpush.msra.mxu0 0.0
  %501 = vmatpush.msra.mxu0 0.0
  %502 = vmatpush.msra.mxu0 0.0
  %503 = vmatpush.msra.mxu0 0.0
  %504 = vmatpush.msra.mxu0 0.0
  %505 = vmatpush.msra.mxu0 0.0
  %506 = vmatpush.msra.mxu0 0.0
  %507 = vmatpush.msra.mxu0 0.0
  %508 = vmatpush.msra.mxu0 0.0
  %509 = vmatpush.msra.mxu0 0.0
  %510 = vmatpush.msra.mxu0 %v48
  %511 = vmatmul.f32.gmra.mxu0 %v493
  %v512 = vpop.f32.mrf.mxu0
  %v513 = vadd.f32 0.0, %v512
  %514 = vdwg.mxu0
  %v516 = vsel %vm51, %v375, 0
  %518 = vmatpush.msra.mxu0 0.0
  %519 = vmatpush.msra.mxu0 0.0
  %520 = vmatpush.msra.mxu0 0.0
  %521 = vmatpush.msra.mxu0 0.0
  %522 = vmatpush.msra.mxu0 0.0
  %523 = vmatpush.msra.mxu0 0.0
  %524 = vmatpush.msra.mxu0 0.0
  %525 = vmatpush.msra.mxu0 0.0
  %526 = vmatpush.msra.mxu0 0.0
  %527 = vmatpush.msra.mxu0 0.0
  %528 = vmatpush.msra.mxu0 0.0
  %529 = vmatpush.msra.mxu0 0.0
  %530 = vmatpush.msra.mxu0 0.0
  %531 = vmatpush.msra.mxu0 0.0
  %532 = vmatpush.msra.mxu0 0.0
  %533 = vmatpush.msra.mxu0 %v49
  %534 = vmatmul.f32.gmra.mxu0 %v516
  %v535 = vpop.f32.mrf.mxu0
  %v536 = vadd.f32 0.0, %v535
  %537 = vdwg.mxu0
  %v539 = vsel %vm51, %v376, 0
  %541 = vmatpush.msra.mxu0 0.0
  %542 = vmatpush.msra.mxu0 0.0
  %543 = vmatpush.msra.mxu0 0.0
  %544 = vmatpush.msra.mxu0 0.0
  %545 = vmatpush.msra.mxu0 0.0
  %546 = vmatpush.msra.mxu0 0.0
  %547 = vmatpush.msra.mxu0 0.0
  %548 = vmatpush.msra.mxu0 0.0
  %549 = vmatpush.msra.mxu0 0.0
  %550 = vmatpush.msra.mxu0 0.0
  %551 = vmatpush.msra.mxu0 0.0
  %552 = vmatpush.msra.mxu0 0.0
  %553 = vmatpush.msra.mxu0 0.0
  %554 = vmatpush.msra.mxu0 0.0
  %555 = vmatpush.msra.mxu0 0.0
  %556 = vmatpush.msra.mxu0 %v50
  %557 = vmatmul.f32.gmra.mxu0 %v539
  %v558 = vpop.f32.mrf.mxu0
  %v559 = vadd.f32 0.0, %v558
  %560 = vdwg.mxu0
  %v561 = vld [vmem:[#allocation2] sm:$0xff]
  %v562 = vld [vmem:[#allocation2 + $0x8] sm:$0xff]
  %v563 = vld [vmem:[#allocation2 + $0x10] sm:$0xff]
  %v564 = vld [vmem:[#allocation2 + $0x18] sm:$0xff]
  %v565 = vld [vmem:[#allocation2 + $0x20] sm:$0xff]
  %v566 = vld [vmem:[#allocation2 + $0x28] sm:$0xff]
  %v567 = vld [vmem:[#allocation2 + $0x30] sm:$0xff]
  %v568 = vld [vmem:[#allocation2 + $0x38] sm:$0xff]
  %v569 = vadd.f32 %v561, %v398
  %v570 = vadd.f32 %v562, %v421
  %v571 = vadd.f32 %v563, %v444
  %v572 = vadd.f32 %v564, %v467
  %v573 = vadd.f32 %v565, %v490
  %v574 = vadd.f32 %v566, %v513
  %v575 = vadd.f32 %v567, %v536
  %v576 = vadd.f32 %v568, %v559
  %577 = vst.msk [vmem:[#allocation2] sm:$0xff] %vm51, %v569
  %578 = vst.msk [vmem:[#allocation2 + $0x8] sm:$0xff] %vm51, %v570
  %579 = vst.msk [vmem:[#allocation2 + $0x10] sm:$0xff] %vm51, %v571
  %580 = vst.msk [vmem:[#allocation2 + $0x18] sm:$0xff] %vm51, %v572
  %581 = vst.msk [vmem:[#allocation2 + $0x20] sm:$0xff] %vm51, %v573
  %582 = vst.msk [vmem:[#allocation2 + $0x28] sm:$0xff] %vm51, %v574
  %583 = vst.msk [vmem:[#allocation2 + $0x30] sm:$0xff] %vm51, %v575
  %584 = vst.msk [vmem:[#allocation2 + $0x38] sm:$0xff] %vm51, %v576
  // Predicated region
  $region18: #{transformer_forward.12} parent=0 // pred_check
    %p585 = pneg %p14
  $region19: #{transformer_forward.12} parent=0 // pred_check_branch
    %587 = sbr.rel (%p585) target = $region21
  $region20: #{transformer_forward.12} parent=0 // pred_region
    %v588 = vld [vmem:[#allocation2] sm:$0xff]
    %v589 = vld [vmem:[#allocation2 + $0x8] sm:$0xff]
    %v590 = vld [vmem:[#allocation2 + $0x10] sm:$0xff]
    %v591 = vld [vmem:[#allocation2 + $0x18] sm:$0xff]
    %v592 = vld [vmem:[#allocation2 + $0x20] sm:$0xff]
    %v593 = vld [vmem:[#allocation2 + $0x28] sm:$0xff]
    %v594 = vld [vmem:[#allocation2 + $0x30] sm:$0xff]
    %v595 = vld [vmem:[#allocation2 + $0x38] sm:$0xff]
    %596 = vst.msk [vmem:[%s3] sm:$0xff] %vm51, %v588
    %597 = vst.msk [vmem:[%s3 + $0x8] sm:$0xff] %vm51, %v589
    %598 = vst.msk [vmem:[%s3 + $0x10] sm:$0xff] %vm51, %v590
    %599 = vst.msk [vmem:[%s3 + $0x18] sm:$0xff] %vm51, %v591
    %600 = vst.msk [vmem:[%s3 + $0x20] sm:$0xff] %vm51, %v592
    %601 = vst.msk [vmem:[%s3 + $0x28] sm:$0xff] %vm51, %v593
    %602 = vst.msk [vmem:[%s3 + $0x30] sm:$0xff] %vm51, %v594
    %603 = vst.msk [vmem:[%s3 + $0x38] sm:$0xff] %vm51, %v595
  $region21: #{transformer_forward.12} parent=0 // pred_fallthru
    _
  // Predicated region
  $region22: #{transformer_forward.12} parent=0 // pred_check
    _
  $region23: #{transformer_forward.12} parent=0 // pred_check_branch
    %605 = sbr.rel (0) target = $region25
  $region24: #{transformer_forward.12} parent=0 // pred_region
    _
  $region25: #{transformer_forward.12} parent=0 // pred_fallthru
    _
  // Predicated region
  $region26: #{transformer_forward.12} parent=0 // pred_check
    _
  $region27: #{transformer_forward.12} parent=0 // pred_check_branch
    %607 = sbr.rel (0) target = $region29
  $region28: #{transformer_forward.12} parent=0 // pred_region
    _
  $region29: #{transformer_forward.12} parent=0 // pred_fallthru
    _

// kernel: transformer_forward.15
$region0: #{transformer_forward.15}
  #allocation0 [shape = 'u32[]', space=smem, size = 0x4, offset = 0x4, fixed_abs, tag = 'smem constant byte address 0x4 - core index']
  #allocation1 [shape = 'u32[72,128]{1,0:T(1,128)}', space=vmem, size = 0x9000, scoped, tag = 'internal scratch']
  #allocation2 [shape = 'f32[16,32]{1,0:T(8,128)}', space=vmem, size = 0x2000, scoped, tag = 'scratch operand']
  %s0 = inlined_call_operand.vmem [shape: f32[16,128], index: 0, kind: input, shape index: {}]
  %s1 = inlined_call_operand.vmem [shape: f32[128,32], index: 1, kind: input, shape index: {}]
  %s2 = inlined_call_operand.vmem [shape: f32[1,32], index: 2, kind: input, shape index: {}]
  %s3 = inlined_call_operand.vmem [shape: f32[16,32], index: 3, kind: input, shape index: {}]
  %s4 = inlined_call_operand.vmem [shape: f32[16,32], index: 4, kind: output, shape index: {}]
  %s5 = sld [smem:[#allocation0]]
  $region34: #{transformer_forward.15} parent=0
    _
  %s7 = ssub.s32 1, %s5
  %s8 = scalar_select 0, %s7, %s5
  // Predicated region
  $region2: #{transformer_forward.15} parent=0 // pred_check
    _
  $region3: #{transformer_forward.15} parent=0 // pred_check_branch
    %10 = sbr.rel (0) target = $region5
  $region4: #{transformer_forward.15} parent=0 // pred_region
    _
  $region5: #{transformer_forward.15} parent=0 // pred_fallthru
    _
  // Predicated region
  $region6: #{transformer_forward.15} parent=0 // pred_check
    _
  $region7: #{transformer_forward.15} parent=0 // pred_check_branch
    %12 = sbr.rel (0) target = $region9
  $region8: #{transformer_forward.15} parent=0 // pred_region
    _
  $region9: #{transformer_forward.15} parent=0 // pred_fallthru
    _
  // Predicated region
  $region10: #{transformer_forward.15} parent=0 // pred_check
    _
  $region11: #{transformer_forward.15} parent=0 // pred_check_branch
    %14 = sbr.rel (0) target = $region13
  $region12: #{transformer_forward.15} parent=0 // pred_region
    _
  $region13: #{transformer_forward.15} parent=0 // pred_fallthru
    _
  // Predicated region
  $region14: #{transformer_forward.15} parent=0 // pred_check
    _
  $region15: #{transformer_forward.15} parent=0 // pred_check_branch
    %16 = sbr.rel (0) target = $region17
  $region16: #{transformer_forward.15} parent=0 // pred_region
    _
  $region17: #{transformer_forward.15} parent=0 // pred_fallthru
    _
  %p17 = scmp.eq.s32.totalorder 0, 0
  // Predicated region
  $region18: #{transformer_forward.15} parent=0 // pred_check
    %p18 = pneg %p17
  $region19: #{transformer_forward.15} parent=0 // pred_check_branch
    %20 = sbr.rel (%p18) target = $region21
  $region20: #{transformer_forward.15} parent=0 // pred_region
    %vm21 = vcmask 261120
    %22 = vst.msk [vmem:[#allocation2] sm:$0xff] %vm21, 0.0
    %23 = vst.msk [vmem:[#allocation2 + $0x8] sm:$0xff] %vm21, 0.0
  $region21: #{transformer_forward.15} parent=0 // pred_fallthru
    _
  %v24 = vld [vmem:[#allocation2] sm:$0xff]
  %v25 = vld [vmem:[#allocation2 + $0x8] sm:$0xff]
  %v26 = vld [vmem:[%s0] sm:$0xff]
  %v27 = vld [vmem:[%s0 + $0x8] sm:$0xff]
  %v28 = vld [vmem:[%s1] sm:$0xff]
  %v29 = vld [vmem:[%s1 + $0x8] sm:$0xff]
  %v30 = vld [vmem:[%s1 + $0x10] sm:$0xff]
  %v31 = vld [vmem:[%s1 + $0x18] sm:$0xff]
  %v32 = vld [vmem:[%s1 + $0x20] sm:$0xff]
  %v33 = vld [vmem:[%s1 + $0x28] sm:$0xff]
  %v34 = vld [vmem:[%s1 + $0x30] sm:$0xff]
  %v35 = vld [vmem:[%s1 + $0x38] sm:$0xff]
  %v36 = vld [vmem:[%s1 + $0x40] sm:$0xff]
  %v37 = vld [vmem:[%s1 + $0x48] sm:$0xff]
  %v38 = vld [vmem:[%s1 + $0x50] sm:$0xff]
  %v39 = vld [vmem:[%s1 + $0x58] sm:$0xff]
  %v40 = vld [vmem:[%s1 + $0x60] sm:$0xff]
  %v41 = vld [vmem:[%s1 + $0x68] sm:$0xff]
  %v42 = vld [vmem:[%s1 + $0x70] sm:$0xff]
  %v43 = vld [vmem:[%s1 + $0x78] sm:$0xff]
  %44 = vmatpush.msra.mxu0 %v43
  %45 = vmatpush.msra.mxu0 %v42
  %46 = vmatpush.msra.mxu0 %v41
  %47 = vmatpush.msra.mxu0 %v40
  %48 = vmatpush.msra.mxu0 %v39
  %49 = vmatpush.msra.mxu0 %v38
  %50 = vmatpush.msra.mxu0 %v37
  %51 = vmatpush.msra.mxu0 %v36
  %52 = vmatpush.msra.mxu0 %v35
  %53 = vmatpush.msra.mxu0 %v34
  %54 = vmatpush.msra.mxu0 %v33
  %55 = vmatpush.msra.mxu0 %v32
  %56 = vmatpush.msra.mxu0 %v31
  %57 = vmatpush.msra.mxu0 %v30
  %58 = vmatpush.msra.mxu0 %v29
  %59 = vmatpush.msra.mxu0 %v28
  %60 = vmatmul.f32.gmra.mxu0 %v26
  %v61 = vpop.f32.mrf.mxu0
  %v62 = vadd.f32 0.0, %v61
  %63 = vmatmul.f32.gmra.mxu0 %v27
  %v64 = vpop.f32.mrf.mxu0
  %v65 = vadd.f32 0.0, %v64
  %66 = vdwg.mxu0
  %v67 = vadd.f32 %v24, %v62
  %v68 = vadd.f32 %v25, %v65
  %vm69 = vcmask 261120
  %70 = vst.msk [vmem:[#allocation2] sm:$0xff] %vm69, %v67
  %71 = vst.msk [vmem:[#allocation2 + $0x8] sm:$0xff] %vm69, %v68
  // Predicated region
  $region22: #{transformer_forward.15} parent=0 // pred_check
    %p72 = pneg %p17
  $region23: #{transformer_forward.15} parent=0 // pred_check_branch
    %74 = sbr.rel (%p72) target = $region25
  $region24: #{transformer_forward.15} parent=0 // pred_region
    %v75 = vld [vmem:[#allocation2] sm:$0xff]
    %v76 = vld [vmem:[#allocation2 + $0x8] sm:$0xff]
    %v77 = vld [vmem:[%s2] sm:$0x1]
    %v79 = vperm.slane %v77, 0
    %v81 = vadd.f32 %v75, %v79
    %v82 = vadd.f32 %v76, %v79
    %v83 = vld [vmem:[%s3] sm:$0xff]
    %v84 = vld [vmem:[%s3 + $0x8] sm:$0xff]
    %v85 = vadd.f32 %v81, %v83
    %v86 = vadd.f32 %v82, %v84
    %87 = vst.msk [vmem:[%s4] sm:$0xff] %vm69, %v85
    %88 = vst.msk [vmem:[%s4 + $0x8] sm:$0xff] %vm69, %v86
  $region25: #{transformer_forward.15} parent=0 // pred_fallthru
    _
  // Predicated region
  $region26: #{transformer_forward.15} parent=0 // pred_check
    _
  $region27: #{transformer_forward.15} parent=0 // pred_check_branch
    %90 = sbr.rel (0) target = $region29
  $region28: #{transformer_forward.15} parent=0 // pred_region
    _
  $region29: #{transformer_forward.15} parent=0 // pred_fallthru
    _
  // Predicated region
  $region30: #{transformer_forward.15} parent=0 // pred_check
    _
  $region31: #{transformer_forward.15} parent=0 // pred_check_branch
    %92 = sbr.rel (0) target = $region33
  $region32: #{transformer_forward.15} parent=0 // pred_region
    _
  $region33: #{transformer_forward.15} parent=0 // pred_fallthru
    _

// kernel: transformer_forward.16
$region0: #{transformer_forward.16}
  #allocation0 [shape = 'u32[]', space=smem, size = 0x4, offset = 0x4, fixed_abs, tag = 'smem constant byte address 0x4 - core index']
  #allocation1 [shape = 'u32[72,128]{1,0:T(1,128)}', space=vmem, size = 0x9000, scoped, tag = 'internal scratch']
  %s0 = inlined_call_operand.vmem [shape: f32[16,32], index: 0, kind: input, shape index: {}]
  %s1 = inlined_call_operand.vmem [shape: f32[1,32], index: 1, kind: input, shape index: {}]
  %s2 = inlined_call_operand.vmem [shape: f32[1,32], index: 2, kind: input, shape index: {}]
  %s3 = inlined_call_operand.vmem [shape: f32[32,96], index: 3, kind: input, shape index: {}]
  %s4 = inlined_call_operand.vmem [shape: f32[1,96], index: 4, kind: input, shape index: {}]
  %s5 = inlined_call_operand.vmem [shape: f32[16,96], index: 5, kind: output, shape index: {}]
  %s6 = sld [smem:[#allocation0]]
  $region30: #{transformer_forward.16} parent=0
    _
  %s8 = ssub.s32 1, %s6
  %s9 = scalar_select 0, %s8, %s6
  // Predicated region
  $region2: #{transformer_forward.16} parent=0 // pred_check
    _
  $region3: #{transformer_forward.16} parent=0 // pred_check_branch
    %11 = sbr.rel (0) target = $region5
  $region4: #{transformer_forward.16} parent=0 // pred_region
    _
  $region5: #{transformer_forward.16} parent=0 // pred_fallthru
    _
  // Predicated region
  $region6: #{transformer_forward.16} parent=0 // pred_check
    _
  $region7: #{transformer_forward.16} parent=0 // pred_check_branch
    %13 = sbr.rel (0) target = $region9
  $region8: #{transformer_forward.16} parent=0 // pred_region
    _
  $region9: #{transformer_forward.16} parent=0 // pred_fallthru
    _
  // Predicated region
  $region10: #{transformer_forward.16} parent=0 // pred_check
    _
  $region11: #{transformer_forward.16} parent=0 // pred_check_branch
    %15 = sbr.rel (0) target = $region13
  $region12: #{transformer_forward.16} parent=0 // pred_region
    _
  $region13: #{transformer_forward.16} parent=0 // pred_fallthru
    _
  // Predicated region
  $region14: #{transformer_forward.16} parent=0 // pred_check
    _
  $region15: #{transformer_forward.16} parent=0 // pred_check_branch
    %17 = sbr.rel (0) target = $region17
  $region16: #{transformer_forward.16} parent=0 // pred_region
    _
  $region17: #{transformer_forward.16} parent=0 // pred_fallthru
    _
  // Predicated region
  $region18: #{transformer_forward.16} parent=0 // pred_check
    _
  $region19: #{transformer_forward.16} parent=0 // pred_check_branch
    %19 = sbr.rel (0) target = $region21
  $region20: #{transformer_forward.16} parent=0 // pred_region
    _
  $region21: #{transformer_forward.16} parent=0 // pred_fallthru
    _
  %v20 = vld [vmem:[%s0] sm:$0xff]
  %v21 = vld [vmem:[%s0 + $0x8] sm:$0xff]
  %vm22 = vcmask 261120
  %v23 = vsel %vm22, %v20, 0.0
  %24 = vadd.xlane.f32.xlu0 %v23
  %v25 = vpop.xlane.xlu0 %24
  %v26 = vsel %vm22, %v21, 0.0
  %27 = vadd.xlane.f32.xlu0 %v26
  %v28 = vpop.xlane.xlu0 %27
  %v29 = vrcp.pop 32.0
  %v30 = vmul.f32 32.0, %v29
  %v31 = vsub.f32 1.0, %v30
  %v32 = vmul.f32 %v29, %v31
  %v33 = vadd.f32 %v29, %v32
  %vm34 = vweird.f32 %v29
  %v35 = vsel %vm34, %v29, %v33
  %v36 = vmul.f32 %v25, %v35
  %v37 = vmul.f32 %v28, %v35
  %v38 = vsub.f32 %v20, %v36
  %v39 = vsub.f32 %v21, %v37
  %v40 = vmul.f32 %v38, %v38
  %v41 = vmul.f32 %v39, %v39
  %v42 = vsel %vm22, %v40, 0.0
  %43 = vadd.xlane.f32.xlu0 %v42
  %v44 = vpop.xlane.xlu0 %43
  %v45 = vsel %vm22, %v41, 0.0
  %46 = vadd.xlane.f32.xlu0 %v45
  %v47 = vpop.xlane.xlu0 %46
  %v48 = vmul.f32 %v44, %v35
  %v49 = vmul.f32 %v47, %v35
  %v50 = vadd.f32 %v48, 1e-05
  %v51 = vadd.f32 %v49, 1e-05
  %v52 = vrsqrt.pop %v50
  %v53 = vmul.f32 %v52, %v50
  %v54 = vmul.f32 %v53, %v52
  %v55 = vmul.f32 0.5, %v54
  %v56 = vsub.f32 1.5, %v55
  %v57 = vmul.f32 %v52, %v56
  %vm58 = vweird.f32 %v50
  %vm59 = vweird.f32 %v52
  %vm60 = vmor %vm58, %vm59
  %v61 = vsel %vm60, %v52, %v57
  %v62 = vrsqrt.pop %v51
  %v63 = vmul.f32 %v62, %v51
  %v64 = vmul.f32 %v63, %v62
  %v65 = vmul.f32 0.5, %v64
  %v66 = vsub.f32 1.5, %v65
  %v67 = vmul.f32 %v62, %v66
  %vm68 = vweird.f32 %v51
  %vm69 = vweird.f32 %v62
  %vm70 = vmor %vm68, %vm69
  %v71 = vsel %vm70, %v62, %v67
  %v72 = vmul.f32 %v38, %v61
  %v73 = vmul.f32 %v39, %v71
  %v74 = vld [vmem:[%s1] sm:$0x1]
  %v76 = vperm.slane %v74, 0
  %v78 = vmul.f32 %v72, %v76
  %v79 = vmul.f32 %v73, %v76
  %v80 = vld [vmem:[%s2] sm:$0x1]
  %v82 = vperm.slane %v80, 0
  %v84 = vadd.f32 %v78, %v82
  %v85 = vadd.f32 %v79, %v82
  %v86 = vld [vmem:[%s3] sm:$0xff]
  %v87 = vld [vmem:[%s3 + $0x8] sm:$0xff]
  %v88 = vld [vmem:[%s3 + $0x10] sm:$0xff]
  %v89 = vld [vmem:[%s3 + $0x18] sm:$0xff]
  %v90 = vld [vmem:[%s4] sm:$0x1]
  %v92 = vperm.slane %v90, 0
  %v95 = vsel %vm22, %v84, 0
  %v98 = vsel %vm22, %v85, 0
  %100 = vmatpush.msra.mxu0 0.0
  %101 = vmatpush.msra.mxu0 0.0
  %102 = vmatpush.msra.mxu0 0.0
  %103 = vmatpush.msra.mxu0 0.0
  %104 = vmatpush.msra.mxu0 0.0
  %105 = vmatpush.msra.mxu0 0.0
  %106 = vmatpush.msra.mxu0 0.0
  %107 = vmatpush.msra.mxu0 0.0
  %108 = vmatpush.msra.mxu0 0.0
  %109 = vmatpush.msra.mxu0 0.0
  %110 = vmatpush.msra.mxu0 0.0
  %111 = vmatpush.msra.mxu0 0.0
  %112 = vmatpush.msra.mxu0 %v89
  %113 = vmatpush.msra.mxu0 %v88
  %114 = vmatpush.msra.mxu0 %v87
  %115 = vmatpush.msra.mxu0 %v86
  %116 = vmatmul.f32.gmra.mxu0 %v95
  %v117 = vpop.f32.mrf.mxu0
  %v118 = vadd.f32 %v92, %v117
  %119 = vmatmul.f32.gmra.mxu0 %v98
  %v120 = vpop.f32.mrf.mxu0
  %v121 = vadd.f32 %v92, %v120
  %122 = vdwg.mxu0
  %vm123 = vcmask 785408
  %124 = vst.msk [vmem:[%s5] sm:$0xff] %vm123, %v118
  %125 = vst.msk [vmem:[%s5 + $0x8] sm:$0xff] %vm123, %v121
  // Predicated region
  $region22: #{transformer_forward.16} parent=0 // pred_check
    _
  $region23: #{transformer_forward.16} parent=0 // pred_check_branch
    %127 = sbr.rel (0) target = $region25
  $region24: #{transformer_forward.16} parent=0 // pred_region
    _
  $region25: #{transformer_forward.16} parent=0 // pred_fallthru
    _
  // Predicated region
  $region26: #{transformer_forward.16} parent=0 // pred_check
    _
  $region27: #{transformer_forward.16} parent=0 // pred_check_branch
    %129 = sbr.rel (0) target = $region29
  $region28: #{transformer_forward.16} parent=0 // pred_region
    _
  $region29: #{transformer_forward.16} parent=0 // pred_fallthru
    _

// kernel: transformer_forward.21
$region0: #{transformer_forward.21}
  #allocation0 [shape = 'u32[]', space=smem, size = 0x4, offset = 0x4, fixed_abs, tag = 'smem constant byte address 0x4 - core index']
  #allocation1 [shape = 'u32[72,128]{1,0:T(1,128)}', space=vmem, size = 0x9000, scoped, tag = 'internal scratch']
  %s0 = inlined_call_operand.vmem [shape: f32[16,32], index: 0, kind: input, shape index: {}]
  %s1 = inlined_call_operand.vmem [shape: f32[1,32], index: 1, kind: input, shape index: {}]
  %s2 = inlined_call_operand.vmem [shape: f32[1,32], index: 2, kind: input, shape index: {}]
  %s3 = inlined_call_operand.hbm [shape: f32[16,32], index: 3, kind: output, shape index: {}]
  %s4 = sld [smem:[#allocation0]]
  $region22: #{transformer_forward.21} parent=0
    _
  %s6 = ssub.s32 1, %s4
  %s7 = scalar_select 0, %s6, %s4
  $region1: #{transformer_forward.21} parent=0
    #allocation2 [shape = 'u8[8192]{0}', space=vmem, size = 0x2000, scoped, tag = 'output window, operand 0, single buffered']
    #allocation3 [shape = 's32[1]{0}', space=sflag, size = 0x4, scoped, tag = 'scoped memory for transformer_forward.21']
    %8 = vsyncpa [#allocation3], 0
    // Predicated region
    $region2: #{transformer_forward.21} parent=1 // pred_check
      _
    $region3: #{transformer_forward.21} parent=1 // pred_check_branch
      %10 = sbr.rel (0) target = $region5
    $region4: #{transformer_forward.21} parent=1 // pred_region
      _
    $region5: #{transformer_forward.21} parent=1 // pred_fallthru
      _
    // Predicated region
    $region6: #{transformer_forward.21} parent=1 // pred_check
      _
    $region7: #{transformer_forward.21} parent=1 // pred_check_branch
      %12 = sbr.rel (0) target = $region9
    $region8: #{transformer_forward.21} parent=1 // pred_region
      _
    $region9: #{transformer_forward.21} parent=1 // pred_fallthru
      _
    // Predicated region
    $region10: #{transformer_forward.21} parent=1 // pred_check
      _
    $region11: #{transformer_forward.21} parent=1 // pred_check_branch
      %14 = sbr.rel (0) target = $region13
    $region12: #{transformer_forward.21} parent=1 // pred_region
      _
    $region13: #{transformer_forward.21} parent=1 // pred_fallthru
      _
    %v15 = vld [vmem:[%s0] sm:$0xff]
    %v16 = vld [vmem:[%s0 + $0x8] sm:$0xff]
    %vm17 = vcmask 261120
    %v18 = vsel %vm17, %v15, 0.0
    %19 = vadd.xlane.f32.xlu0 %v18
    %v20 = vpop.xlane.xlu0 %19
    %v21 = vsel %vm17, %v16, 0.0
    %22 = vadd.xlane.f32.xlu0 %v21
    %v23 = vpop.xlane.xlu0 %22
    %v24 = vrcp.pop 32.0
    %v25 = vmul.f32 32.0, %v24
    %v26 = vsub.f32 1.0, %v25
    %v27 = vmul.f32 %v24, %v26
    %v28 = vadd.f32 %v24, %v27
    %vm29 = vweird.f32 %v24
    %v30 = vsel %vm29, %v24, %v28
    %v31 = vmul.f32 %v20, %v30
    %v32 = vmul.f32 %v23, %v30
    %v33 = vsub.f32 %v15, %v31
    %v34 = vsub.f32 %v16, %v32
    %v35 = vmul.f32 %v33, %v33
    %v36 = vmul.f32 %v34, %v34
    %v37 = vsel %vm17, %v35, 0.0
    %38 = vadd.xlane.f32.xlu0 %v37
    %v39 = vpop.xlane.xlu0 %38
    %v40 = vsel %vm17, %v36, 0.0
    %41 = vadd.xlane.f32.xlu0 %v40
    %v42 = vpop.xlane.xlu0 %41
    %v43 = vmul.f32 %v39, %v30
    %v44 = vmul.f32 %v42, %v30
    %v45 = vadd.f32 %v43, 1e-05
    %v46 = vadd.f32 %v44, 1e-05
    %v47 = vrsqrt.pop %v45
    %v48 = vmul.f32 %v47, %v45
    %v49 = vmul.f32 %v48, %v47
    %v50 = vmul.f32 0.5, %v49
    %v51 = vsub.f32 1.5, %v50
    %v52 = vmul.f32 %v47, %v51
    %vm53 = vweird.f32 %v45
    %vm54 = vweird.f32 %v47
    %vm55 = vmor %vm53, %vm54
    %v56 = vsel %vm55, %v47, %v52
    %v57 = vrsqrt.pop %v46
    %v58 = vmul.f32 %v57, %v46
    %v59 = vmul.f32 %v58, %v57
    %v60 = vmul.f32 0.5, %v59
    %v61 = vsub.f32 1.5, %v60
    %v62 = vmul.f32 %v57, %v61
    %vm63 = vweird.f32 %v46
    %vm64 = vweird.f32 %v57
    %vm65 = vmor %vm63, %vm64
    %v66 = vsel %vm65, %v57, %v62
    %v67 = vmul.f32 %v33, %v56
    %v68 = vmul.f32 %v34, %v66
    %v69 = vld [vmem:[%s1] sm:$0x1]
    %v71 = vperm.slane %v69, 0
    %v73 = vmul.f32 %v67, %v71
    %v74 = vmul.f32 %v68, %v71
    %v75 = vld [vmem:[%s2] sm:$0x1]
    %v77 = vperm.slane %v75, 0
    %v79 = vadd.f32 %v73, %v77
    %v80 = vadd.f32 %v74, %v77
    %81 = vst.msk [vmem:[#allocation2] sm:$0xff] %vm17, %v79
    %82 = vst.msk [vmem:[#allocation2 + $0x8] sm:$0xff] %vm17, %v80
    // Predicated region
    $region14: #{transformer_forward.21} parent=1 // pred_check
      _
    $region15: #{transformer_forward.21} parent=1 // pred_check_branch
      %84 = sbr.rel (0) target = $region17
    $region16: #{transformer_forward.21} parent=1 // pred_region
      %86 = vsyncadd [#allocation3], 0
      %s87 = sshll.u32 [#allocation2], 4
      %s88 = int_to_ptr.vmem [resolvable:$true] %s87
      %s89 = sshll.u32 %s3, 4
      %s90 = int_to_ptr.hbm [resolvable:$true] %s89
      %95 = dma.vmem_to_hbm [thread:$0]  %s88, 256, %s90, [#allocation3], 128, 128, 8
    $region17: #{transformer_forward.21} parent=1 // pred_fallthru
      _
    // Predicated region
    $region18: #{transformer_forward.21} parent=1 // pred_check
      _
    $region19: #{transformer_forward.21} parent=1 // pred_check_branch
      %97 = sbr.rel (0) target = $region21
    $region20: #{transformer_forward.21} parent=1 // pred_region
      %99 = dma.done [#allocation3], 256
    $region21: #{transformer_forward.21} parent=1 // pred_fallthru
      _
    %100 = vsyncpa [#allocation3], 1

</llo_original>
